<compile_context>
chip_gen: v7x
topology: tpu7x:2x2x1
jax: 0.10.0
libtpu: 0.0.40
codegen_flags: <defaults>
</compile_context>

<pallas_src>
import functools

import jax
import jax.numpy as jnp
from jax.experimental import pallas as pl
from jax.experimental.pallas import tpu as pltpu

LANES = 128
NEG = -1e9  # padding value, far below any valid CRF score (valid >= ~-2e4)


def _bilstm_crf_kernel(xcat_ref, wih_ref, b_ref, whh_ref, wtagf_ref, wtagb_ref,
                       btag_ref, transft_ref, tstop_ref,
                       feats_ref, bptrs_ref, term_ref,
                       *, T, Hd, K, start_idx):
    """Fused BiLSTM (zero initial state, PyTorch default) + hidden2tag linear
    + CRF Viterbi forward (max/argmax lattice) — backpointers go out."""
    f32 = jnp.float32
    H2 = 2 * Hd  # fused per-step state width: [fwd | bwd]

    # ---- input projection for all timesteps & both directions: one matmul ----
    # xcat row t = [x_t | x_{T-1-t}]; wih packs fwd weights (top rows) into the
    # fwd gate lanes and bwd weights (bottom rows) into the bwd gate lanes, so
    # row t of xg already holds the time-reversed input gates for the bwd dir.
    xg = jnp.dot(xcat_ref[...], wih_ref[...],
                 preferred_element_type=f32) + b_ref[...]              # (T, 8*Hd)

    whh = whh_ref[...]                                                 # (2*Hd, 8*Hd)

    h = jnp.zeros((1, H2), f32)   # [h_fwd | h_bwd]
    c = jnp.zeros((1, H2), f32)   # [c_fwd | c_bwd]
    h_rows = []

    # ---- fused fwd+bwd recurrence, fully unrolled (T is static & small) ----
    for s in range(T):
        g_pre = xg[s:s + 1, :] + jnp.dot(h, whh, preferred_element_type=f32)
        # 2 EUP pushes per step (full 128 lanes each), then slice gate groups:
        # lanes grouped per gate type, each 2*Hd (=32) lanes = [fwd | bwd].
        sg = jax.nn.sigmoid(g_pre)
        th = jnp.tanh(g_pre)
        i_g = sg[:, 0 * H2:1 * H2]
        f_g = sg[:, 1 * H2:2 * H2]
        g_g = th[:, 2 * H2:3 * H2]
        o_g = sg[:, 3 * H2:4 * H2]
        c = f_g * c + i_g * g_g
        h = o_g * jnp.tanh(c)
        h_rows.append(h)

    # ---- hidden2tag: no per-row lane slicing ----
    # H row t = [h_fwd_t | h_bwd at reverse-step t]; H_rev row t = h_rows[T-1-t]
    # so its bwd half is the backward output at original time t.  Per-direction
    # zero-padded weights pick the right halves, so the time reversal costs
    # nothing beyond a different trace-time stacking order.
    H = jnp.concatenate(h_rows, axis=0)                                # (T, 2*Hd)
    H_rev = jnp.concatenate(h_rows[::-1], axis=0)                      # (T, 2*Hd)
    feats = (jnp.dot(H, wtagf_ref[...], preferred_element_type=f32)
             + jnp.dot(H_rev, wtagb_ref[...], preferred_element_type=f32)
             + btag_ref[...])                                          # (T, 128)
    feats_ref[...] = feats

    # ---- CRF Viterbi forward pass, vectorized over the "from" tag ----
    trans_ft = transft_ref[...]                 # trans_ft[from, to], NEG padded
    rows_pad, lanes_n = trans_ft.shape

    sub = jax.lax.broadcasted_iota(jnp.int32, (rows_pad, lanes_n), 0)
    lane = jax.lax.broadcasted_iota(jnp.int32, (rows_pad, lanes_n), 1)
    eye = sub == lane                           # row<->lane "transpose" mask
    sub_f = sub.astype(f32)

    # initial forward_var as a sublane column over "from" tags
    sub_col = jax.lax.broadcasted_iota(jnp.int32, (rows_pad, 1), 0)
    fv_col = jnp.where(sub_col == start_idx, 0.0, -10000.0)
    fv_col = jnp.where(sub_col < K, fv_col, NEG).astype(f32)           # (rows_pad, 1)

    bp_rows = []
    fv_row = None
    for t in range(T):                          # unrolled lattice steps
        cand = trans_ft + fv_col                                       # (rows_pad, 128)
        best = jnp.max(cand, axis=0, keepdims=True)                    # (1, 128)
        # first-max tiebreak (matches torch.argmax): smallest 'from' index
        bptr = jnp.min(jnp.where(cand == best, sub_f, 1e9),
                       axis=0, keepdims=True).astype(jnp.int32)        # (1, 128)
        bp_rows.append(bptr)
        fv_row = best + feats[t:t + 1, :]                              # (1, 128)
        if t + 1 < T:
            # row -> column: masked lane-reduce (pad lanes never win later maxes)
            fv_col = jnp.sum(jnp.where(eye, fv_row, 0.0),
                             axis=1, keepdims=True)                    # (rows_pad, 1)

    bptrs_ref[...] = jnp.concatenate(bp_rows, axis=0)   # (T, 128) int32
    term_ref[...] = fv_row + tstop_ref[...]             # terminal = fv + trans[STOP]


def _pack_gate_cols(w_f, w_b, Hd):
    """(in, 4*Hd) fwd/bwd weights (PyTorch gate order i,f,g,o) -> (in, 8*Hd)
    columns grouped per gate type with directions adjacent:
    [i_f i_b f_f f_b g_f g_b o_f o_b], each chunk Hd wide."""
    chunks = []
    for g in range(4):
        chunks.append(w_f[:, g * Hd:(g + 1) * Hd])
        chunks.append(w_b[:, g * Hd:(g + 1) * Hd])
    return jnp.concatenate(chunks, axis=1)


def pack_bilstm_crf_params(params, transitions, *, tag_size, stop_idx):
    """One-time weight packing (hoisted out of the per-sentence call)."""
    f32 = jnp.float32
    Hd = params["whh_f"].shape[1]        # hidden per direction
    E = params["wih_f"].shape[1]
    K = tag_size

    # --- LSTM weights: pre-transposed, gates grouped, directions fused ---
    wih_fT, wih_bT = params["wih_f"].T, params["wih_b"].T       # (E, 4*Hd)
    z_e = jnp.zeros((E, 4 * Hd), f32)
    wih_big = jnp.concatenate(
        [_pack_gate_cols(wih_fT, z_e, Hd),        # top rows: fwd input weights
         _pack_gate_cols(z_e, wih_bT, Hd)],       # bottom rows: bwd input weights
        axis=0)                                   # (2*E, 8*Hd)

    whh_fT, whh_bT = params["whh_f"].T, params["whh_b"].T       # (Hd, 4*Hd)
    z_h = jnp.zeros((Hd, 4 * Hd), f32)
    whh_bd = jnp.concatenate(
        [_pack_gate_cols(whh_fT, z_h, Hd),
         _pack_gate_cols(z_h, whh_bT, Hd)], axis=0)             # (2*Hd, 8*Hd)

    b_s = _pack_gate_cols(params["b_f"], params["b_b"], Hd)     # (1, 8*Hd)

    # --- hidden2tag: per-direction zero-padded, lane-dense to 128 tag lanes ---
    wtagT = params["wtag"].T                                    # (2*Hd, K)
    wtag_f = jnp.zeros((2 * Hd, LANES), f32).at[:Hd, :K].set(wtagT[:Hd, :])
    wtag_b = jnp.zeros((2 * Hd, LANES), f32).at[Hd:, :K].set(wtagT[Hd:, :])
    btag = jnp.zeros((1, LANES), f32).at[:, :K].set(params["btag"])

    # --- CRF transition tables: trans_ft[from, to] = transitions[to, from] ---
    rows_pad = max(8, ((K + 7) // 8) * 8)
    trans_ft = jnp.full((rows_pad, LANES), NEG, f32).at[:K, :K].set(transitions.T)
    tstop = jnp.full((1, LANES), NEG, f32).at[0, :K].set(transitions[stop_idx])

    return dict(wih_big=wih_big, whh_bd=whh_bd, b_s=b_s,
                wtag_f=wtag_f, wtag_b=wtag_b, btag=btag,
                trans_ft=trans_ft, tstop=tstop)


@functools.partial(jax.jit, static_argnames=("start_idx", "tag_size"))
def bilstm_crf_forward(sentence, embed_table, packed, *, start_idx, tag_size):
    """forward(sentence): embedding -> BiLSTM -> hidden2tag -> CRF decode."""
    f32 = jnp.float32
    embeds = embed_table[sentence]                       # (T, E) gather
    T, E = embeds.shape
    K = tag_size
    Hd = packed["whh_bd"].shape[0] // 2
    H8 = packed["whh_bd"].shape[1]
    rows_pad = packed["trans_ft"].shape[0]

    # fused input: row t = [x_t | x_{T-1-t}] so the bwd half reads reversed time
    xcat = jnp.concatenate([embeds, embeds[::-1]], axis=1)      # (T, 2*E)

    kernel = functools.partial(_bilstm_crf_kernel, T=T, Hd=Hd, K=K,
                               start_idx=start_idx)

    def full(shape):
        nd = len(shape)
        return pl.BlockSpec(shape, lambda i, _nd=nd: (0,) * _nd)

    feats_p, bptrs_p, term_p = pl.pallas_call(
        kernel,
        out_shape=(jax.ShapeDtypeStruct((T, LANES), f32),
                   jax.ShapeDtypeStruct((T, LANES), jnp.int32),
                   jax.ShapeDtypeStruct((1, LANES), f32)),
        grid=(1,),
        in_specs=[full((T, 2 * E)), full((2 * E, H8)), full((1, H8)),
                  full((2 * Hd, H8)), full((2 * Hd, LANES)), full((2 * Hd, LANES)),
                  full((1, LANES)), full((rows_pad, LANES)), full((1, LANES))],
        out_specs=(full((T, LANES)), full((T, LANES)), full((1, LANES))),
        compiler_params=pltpu.CompilerParams(
            dimension_semantics=("arbitrary",)),
    )(xcat, packed["wih_big"], packed["b_s"], packed["whh_bd"],
      packed["wtag_f"], packed["wtag_b"], packed["btag"],
      packed["trans_ft"], packed["tstop"])

    feats = feats_p[:, :K]
    bptrs = bptrs_p[:, :K]
    terminal = term_p[0, :K]

    # TODO(synk): data-dependent Viterbi backtrack (tiny scalar gather chain of
    # length T over 5 tags) stays in plain JAX — no useful Pallas hot path.
    best_last = jnp.argmax(terminal)
    best_score = terminal[best_last]

    def back(tag, bp):
        return bp[tag], tag

    _, path = jax.lax.scan(back, best_last, bptrs, reverse=True)
    return best_score, path, feats


if __name__ == "__main__":
    key = jax.random.PRNGKey(0)

    # Module hyper-parameters (small, consistent with the PyTorch forward).
    vocab_size = 20
    embedding_dim = 32
    hidden_dim = 32            # -> Hd = 16 per direction, 8*Hd = 128 gate lanes
    Hd = hidden_dim // 2
    tag_to_ix = {"B": 0, "I": 1, "O": 2, "<START>": 3, "<STOP>": 4}
    K = len(tag_to_ix)
    T = 8                      # sequence length
    batch = 1                  # single sentence, as in the tutorial forward()

    keys = jax.random.split(key, 12)
    u = lambda k, shape: jax.random.uniform(k, shape, jnp.float32, -0.1, 0.1)

    embed_table = u(keys[0], (vocab_size, embedding_dim))
    params = dict(
        wih_f=u(keys[1], (4 * Hd, embedding_dim)),
        whh_f=u(keys[2], (4 * Hd, Hd)),
        b_f=u(keys[3], (1, 4 * Hd)),       # combined b_ih + b_hh (forward dir)
        wih_b=u(keys[4], (4 * Hd, embedding_dim)),
        whh_b=u(keys[5], (4 * Hd, Hd)),
        b_b=u(keys[6], (1, 4 * Hd)),       # combined b_ih + b_hh (backward dir)
        wtag=u(keys[7], (K, hidden_dim)),
        btag=u(keys[8], (1, K)),
    )
    transitions = 0.1 * jax.random.normal(keys[9], (K, K), jnp.float32)
    transitions = transitions.at[tag_to_ix["<START>"], :].set(-10000.0)
    transitions = transitions.at[:, tag_to_ix["<STOP>"]].set(-10000.0)

    sentence = jax.random.randint(keys[10], (batch, T), 0, vocab_size)  # (1, T)

    # One-time packing (hoisted out of the jitted per-sentence forward).
    packed = pack_bilstm_crf_params(params, transitions,
                                    tag_size=K, stop_idx=tag_to_ix["<STOP>"])
    packed = jax.device_put(packed)

    score, tag_seq, feats = bilstm_crf_forward(
        sentence[0], embed_table, packed,
        start_idx=tag_to_ix["<START>"], tag_size=K)

    jax.block_until_ready((score, tag_seq, feats))
    print("KERNEL_OK")
</pallas_src>

<mosaic_0001>
module attributes {stable_mosaic.version = 11 : i64} {
  func.func @_bilstm_crf_kernel(%arg0: i32, %arg1: memref<8x64xf32, #tpu.memory_space<vmem>>, %arg2: memref<64x128xf32, #tpu.memory_space<vmem>>, %arg3: memref<1x128xf32, #tpu.memory_space<vmem>>, %arg4: memref<32x128xf32, #tpu.memory_space<vmem>>, %arg5: memref<32x128xf32, #tpu.memory_space<vmem>>, %arg6: memref<32x128xf32, #tpu.memory_space<vmem>>, %arg7: memref<1x128xf32, #tpu.memory_space<vmem>>, %arg8: memref<8x128xf32, #tpu.memory_space<vmem>>, %arg9: memref<1x128xf32, #tpu.memory_space<vmem>>, %arg10: memref<8x128xf32, #tpu.memory_space<vmem>>, %arg11: memref<8x128xi32, #tpu.memory_space<vmem>>, %arg12: memref<1x128xf32, #tpu.memory_space<vmem>>) attributes {dimension_semantics = [#tpu.dimension_semantics<arbitrary>], iteration_bounds = array<i64: 1>, scalar_prefetch = 0 : i64, scratch_operands = 0 : i64, tpu.core_type = #tpu.core_type<tc>, window_params = [{pipeline_mode = #tpu.pipeline_mode<synchronous>, transform_indices = @transform_0, window_bounds = array<i64: 8, 64>}, {pipeline_mode = #tpu.pipeline_mode<synchronous>, transform_indices = @transform_1, window_bounds = array<i64: 64, 128>}, {pipeline_mode = #tpu.pipeline_mode<synchronous>, transform_indices = @transform_2, window_bounds = array<i64: 1, 128>}, {pipeline_mode = #tpu.pipeline_mode<synchronous>, transform_indices = @transform_3, window_bounds = array<i64: 32, 128>}, {pipeline_mode = #tpu.pipeline_mode<synchronous>, transform_indices = @transform_4, window_bounds = array<i64: 32, 128>}, {pipeline_mode = #tpu.pipeline_mode<synchronous>, transform_indices = @transform_5, window_bounds = array<i64: 32, 128>}, {pipeline_mode = #tpu.pipeline_mode<synchronous>, transform_indices = @transform_6, window_bounds = array<i64: 1, 128>}, {pipeline_mode = #tpu.pipeline_mode<synchronous>, transform_indices = @transform_7, window_bounds = array<i64: 8, 128>}, {pipeline_mode = #tpu.pipeline_mode<synchronous>, transform_indices = @transform_8, window_bounds = array<i64: 1, 128>}, {pipeline_mode = #tpu.pipeline_mode<synchronous>, transform_indices = @transform_9, window_bounds = array<i64: 8, 128>}, {pipeline_mode = #tpu.pipeline_mode<synchronous>, transform_indices = @transform_10, window_bounds = array<i64: 8, 128>}, {pipeline_mode = #tpu.pipeline_mode<synchronous>, transform_indices = @transform_11, window_bounds = array<i64: 1, 128>}]} {
    %c0 = arith.constant 0 : index
    %c0_0 = arith.constant 0 : index
    %0 = vector.load %arg1[%c0, %c0_0] : memref<8x64xf32, #tpu.memory_space<vmem>>, vector<8x64xf32>
    %c0_1 = arith.constant 0 : index
    %c0_2 = arith.constant 0 : index
    %1 = vector.load %arg2[%c0_1, %c0_2] : memref<64x128xf32, #tpu.memory_space<vmem>>, vector<64x128xf32>
    %cst = arith.constant dense<0.000000e+00> : vector<8x128xf32>
    %2 = tpu.matmul %0, %1, %cst {dimension_numbers = #tpu.dot_dimension_numbers<[1], [0], [0], [1], [0, 0, 1, 1], [], []>} : vector<8x64xf32>, vector<64x128xf32>, vector<8x128xf32> -> vector<8x128xf32>
    %c0_3 = arith.constant 0 : index
    %c0_4 = arith.constant 0 : index
    %3 = vector.load %arg3[%c0_3, %c0_4] : memref<1x128xf32, #tpu.memory_space<vmem>>, vector<1x128xf32>
    %4 = vector.broadcast %3 : vector<1x128xf32> to vector<8x128xf32>
    %5 = arith.addf %2, %4 : vector<8x128xf32>
    %c0_5 = arith.constant 0 : index
    %c0_6 = arith.constant 0 : index
    %6 = vector.load %arg4[%c0_5, %c0_6] : memref<32x128xf32, #tpu.memory_space<vmem>>, vector<32x128xf32>
    %cst_7 = arith.constant 0.000000e+00 : f32
    %7 = vector.broadcast %cst_7 : f32 to vector<1x32xf32>
    %cst_8 = arith.constant 0.000000e+00 : f32
    %8 = vector.broadcast %cst_8 : f32 to vector<1x32xf32>
    %9 = vector.extract_strided_slice %5 {offsets = [0, 0], sizes = [1, 128], strides = [1, 1]} : vector<8x128xf32> to vector<1x128xf32>
    %cst_9 = arith.constant dense<0.000000e+00> : vector<1x128xf32>
    %10 = tpu.matmul %7, %6, %cst_9 {dimension_numbers = #tpu.dot_dimension_numbers<[1], [0], [0], [1], [0, 0, 1, 1], [], []>} : vector<1x32xf32>, vector<32x128xf32>, vector<1x128xf32> -> vector<1x128xf32>
    %11 = arith.addf %9, %10 : vector<1x128xf32>
    %12 = arith.negf %11 : vector<1x128xf32>
    %13 = math.exp %12 : vector<1x128xf32>
    %cst_10 = arith.constant 1.000000e+00 : f32
    %14 = vector.broadcast %cst_10 : f32 to vector<1x128xf32>
    %15 = arith.addf %14, %13 : vector<1x128xf32>
    %16 = arith.divf %14, %15 : vector<1x128xf32>
    %17 = math.tanh %11 : vector<1x128xf32>
    %18 = vector.extract_strided_slice %16 {offsets = [0, 0], sizes = [1, 32], strides = [1, 1]} : vector<1x128xf32> to vector<1x32xf32>
    %19 = vector.extract_strided_slice %16 {offsets = [0, 32], sizes = [1, 32], strides = [1, 1]} : vector<1x128xf32> to vector<1x32xf32>
    %20 = vector.extract_strided_slice %17 {offsets = [0, 64], sizes = [1, 32], strides = [1, 1]} : vector<1x128xf32> to vector<1x32xf32>
    %21 = vector.extract_strided_slice %16 {offsets = [0, 96], sizes = [1, 32], strides = [1, 1]} : vector<1x128xf32> to vector<1x32xf32>
    %22 = arith.mulf %19, %8 : vector<1x32xf32>
    %23 = arith.mulf %18, %20 : vector<1x32xf32>
    %24 = arith.addf %22, %23 : vector<1x32xf32>
    %25 = math.tanh %24 : vector<1x32xf32>
    %26 = arith.mulf %21, %25 : vector<1x32xf32>
    %27 = vector.extract_strided_slice %5 {offsets = [1, 0], sizes = [1, 128], strides = [1, 1]} : vector<8x128xf32> to vector<1x128xf32>
    %cst_11 = arith.constant dense<0.000000e+00> : vector<1x128xf32>
    %28 = tpu.matmul %26, %6, %cst_11 {dimension_numbers = #tpu.dot_dimension_numbers<[1], [0], [0], [1], [0, 0, 1, 1], [], []>} : vector<1x32xf32>, vector<32x128xf32>, vector<1x128xf32> -> vector<1x128xf32>
    %29 = arith.addf %27, %28 : vector<1x128xf32>
    %30 = arith.negf %29 : vector<1x128xf32>
    %31 = math.exp %30 : vector<1x128xf32>
    %cst_12 = arith.constant 1.000000e+00 : f32
    %32 = vector.broadcast %cst_12 : f32 to vector<1x128xf32>
    %33 = arith.addf %32, %31 : vector<1x128xf32>
    %34 = arith.divf %32, %33 : vector<1x128xf32>
    %35 = math.tanh %29 : vector<1x128xf32>
    %36 = vector.extract_strided_slice %34 {offsets = [0, 0], sizes = [1, 32], strides = [1, 1]} : vector<1x128xf32> to vector<1x32xf32>
    %37 = vector.extract_strided_slice %34 {offsets = [0, 32], sizes = [1, 32], strides = [1, 1]} : vector<1x128xf32> to vector<1x32xf32>
    %38 = vector.extract_strided_slice %35 {offsets = [0, 64], sizes = [1, 32], strides = [1, 1]} : vector<1x128xf32> to vector<1x32xf32>
    %39 = vector.extract_strided_slice %34 {offsets = [0, 96], sizes = [1, 32], strides = [1, 1]} : vector<1x128xf32> to vector<1x32xf32>
    %40 = arith.mulf %37, %24 : vector<1x32xf32>
    %41 = arith.mulf %36, %38 : vector<1x32xf32>
    %42 = arith.addf %40, %41 : vector<1x32xf32>
    %43 = math.tanh %42 : vector<1x32xf32>
    %44 = arith.mulf %39, %43 : vector<1x32xf32>
    %45 = vector.extract_strided_slice %5 {offsets = [2, 0], sizes = [1, 128], strides = [1, 1]} : vector<8x128xf32> to vector<1x128xf32>
    %cst_13 = arith.constant dense<0.000000e+00> : vector<1x128xf32>
    %46 = tpu.matmul %44, %6, %cst_13 {dimension_numbers = #tpu.dot_dimension_numbers<[1], [0], [0], [1], [0, 0, 1, 1], [], []>} : vector<1x32xf32>, vector<32x128xf32>, vector<1x128xf32> -> vector<1x128xf32>
    %47 = arith.addf %45, %46 : vector<1x128xf32>
    %48 = arith.negf %47 : vector<1x128xf32>
    %49 = math.exp %48 : vector<1x128xf32>
    %cst_14 = arith.constant 1.000000e+00 : f32
    %50 = vector.broadcast %cst_14 : f32 to vector<1x128xf32>
    %51 = arith.addf %50, %49 : vector<1x128xf32>
    %52 = arith.divf %50, %51 : vector<1x128xf32>
    %53 = math.tanh %47 : vector<1x128xf32>
    %54 = vector.extract_strided_slice %52 {offsets = [0, 0], sizes = [1, 32], strides = [1, 1]} : vector<1x128xf32> to vector<1x32xf32>
    %55 = vector.extract_strided_slice %52 {offsets = [0, 32], sizes = [1, 32], strides = [1, 1]} : vector<1x128xf32> to vector<1x32xf32>
    %56 = vector.extract_strided_slice %53 {offsets = [0, 64], sizes = [1, 32], strides = [1, 1]} : vector<1x128xf32> to vector<1x32xf32>
    %57 = vector.extract_strided_slice %52 {offsets = [0, 96], sizes = [1, 32], strides = [1, 1]} : vector<1x128xf32> to vector<1x32xf32>
    %58 = arith.mulf %55, %42 : vector<1x32xf32>
    %59 = arith.mulf %54, %56 : vector<1x32xf32>
    %60 = arith.addf %58, %59 : vector<1x32xf32>
    %61 = math.tanh %60 : vector<1x32xf32>
    %62 = arith.mulf %57, %61 : vector<1x32xf32>
    %63 = vector.extract_strided_slice %5 {offsets = [3, 0], sizes = [1, 128], strides = [1, 1]} : vector<8x128xf32> to vector<1x128xf32>
    %cst_15 = arith.constant dense<0.000000e+00> : vector<1x128xf32>
    %64 = tpu.matmul %62, %6, %cst_15 {dimension_numbers = #tpu.dot_dimension_numbers<[1], [0], [0], [1], [0, 0, 1, 1], [], []>} : vector<1x32xf32>, vector<32x128xf32>, vector<1x128xf32> -> vector<1x128xf32>
    %65 = arith.addf %63, %64 : vector<1x128xf32>
    %66 = arith.negf %65 : vector<1x128xf32>
    %67 = math.exp %66 : vector<1x128xf32>
    %cst_16 = arith.constant 1.000000e+00 : f32
    %68 = vector.broadcast %cst_16 : f32 to vector<1x128xf32>
    %69 = arith.addf %68, %67 : vector<1x128xf32>
    %70 = arith.divf %68, %69 : vector<1x128xf32>
    %71 = math.tanh %65 : vector<1x128xf32>
    %72 = vector.extract_strided_slice %70 {offsets = [0, 0], sizes = [1, 32], strides = [1, 1]} : vector<1x128xf32> to vector<1x32xf32>
    %73 = vector.extract_strided_slice %70 {offsets = [0, 32], sizes = [1, 32], strides = [1, 1]} : vector<1x128xf32> to vector<1x32xf32>
    %74 = vector.extract_strided_slice %71 {offsets = [0, 64], sizes = [1, 32], strides = [1, 1]} : vector<1x128xf32> to vector<1x32xf32>
    %75 = vector.extract_strided_slice %70 {offsets = [0, 96], sizes = [1, 32], strides = [1, 1]} : vector<1x128xf32> to vector<1x32xf32>
    %76 = arith.mulf %73, %60 : vector<1x32xf32>
    %77 = arith.mulf %72, %74 : vector<1x32xf32>
    %78 = arith.addf %76, %77 : vector<1x32xf32>
    %79 = math.tanh %78 : vector<1x32xf32>
    %80 = arith.mulf %75, %79 : vector<1x32xf32>
    %81 = vector.extract_strided_slice %5 {offsets = [4, 0], sizes = [1, 128], strides = [1, 1]} : vector<8x128xf32> to vector<1x128xf32>
    %cst_17 = arith.constant dense<0.000000e+00> : vector<1x128xf32>
    %82 = tpu.matmul %80, %6, %cst_17 {dimension_numbers = #tpu.dot_dimension_numbers<[1], [0], [0], [1], [0, 0, 1, 1], [], []>} : vector<1x32xf32>, vector<32x128xf32>, vector<1x128xf32> -> vector<1x128xf32>
    %83 = arith.addf %81, %82 : vector<1x128xf32>
    %84 = arith.negf %83 : vector<1x128xf32>
    %85 = math.exp %84 : vector<1x128xf32>
    %cst_18 = arith.constant 1.000000e+00 : f32
    %86 = vector.broadcast %cst_18 : f32 to vector<1x128xf32>
    %87 = arith.addf %86, %85 : vector<1x128xf32>
    %88 = arith.divf %86, %87 : vector<1x128xf32>
    %89 = math.tanh %83 : vector<1x128xf32>
    %90 = vector.extract_strided_slice %88 {offsets = [0, 0], sizes = [1, 32], strides = [1, 1]} : vector<1x128xf32> to vector<1x32xf32>
    %91 = vector.extract_strided_slice %88 {offsets = [0, 32], sizes = [1, 32], strides = [1, 1]} : vector<1x128xf32> to vector<1x32xf32>
    %92 = vector.extract_strided_slice %89 {offsets = [0, 64], sizes = [1, 32], strides = [1, 1]} : vector<1x128xf32> to vector<1x32xf32>
    %93 = vector.extract_strided_slice %88 {offsets = [0, 96], sizes = [1, 32], strides = [1, 1]} : vector<1x128xf32> to vector<1x32xf32>
    %94 = arith.mulf %91, %78 : vector<1x32xf32>
    %95 = arith.mulf %90, %92 : vector<1x32xf32>
    %96 = arith.addf %94, %95 : vector<1x32xf32>
    %97 = math.tanh %96 : vector<1x32xf32>
    %98 = arith.mulf %93, %97 : vector<1x32xf32>
    %99 = vector.extract_strided_slice %5 {offsets = [5, 0], sizes = [1, 128], strides = [1, 1]} : vector<8x128xf32> to vector<1x128xf32>
    %cst_19 = arith.constant dense<0.000000e+00> : vector<1x128xf32>
    %100 = tpu.matmul %98, %6, %cst_19 {dimension_numbers = #tpu.dot_dimension_numbers<[1], [0], [0], [1], [0, 0, 1, 1], [], []>} : vector<1x32xf32>, vector<32x128xf32>, vector<1x128xf32> -> vector<1x128xf32>
    %101 = arith.addf %99, %100 : vector<1x128xf32>
    %102 = arith.negf %101 : vector<1x128xf32>
    %103 = math.exp %102 : vector<1x128xf32>
    %cst_20 = arith.constant 1.000000e+00 : f32
    %104 = vector.broadcast %cst_20 : f32 to vector<1x128xf32>
    %105 = arith.addf %104, %103 : vector<1x128xf32>
    %106 = arith.divf %104, %105 : vector<1x128xf32>
    %107 = math.tanh %101 : vector<1x128xf32>
    %108 = vector.extract_strided_slice %106 {offsets = [0, 0], sizes = [1, 32], strides = [1, 1]} : vector<1x128xf32> to vector<1x32xf32>
    %109 = vector.extract_strided_slice %106 {offsets = [0, 32], sizes = [1, 32], strides = [1, 1]} : vector<1x128xf32> to vector<1x32xf32>
    %110 = vector.extract_strided_slice %107 {offsets = [0, 64], sizes = [1, 32], strides = [1, 1]} : vector<1x128xf32> to vector<1x32xf32>
    %111 = vector.extract_strided_slice %106 {offsets = [0, 96], sizes = [1, 32], strides = [1, 1]} : vector<1x128xf32> to vector<1x32xf32>
    %112 = arith.mulf %109, %96 : vector<1x32xf32>
    %113 = arith.mulf %108, %110 : vector<1x32xf32>
    %114 = arith.addf %112, %113 : vector<1x32xf32>
    %115 = math.tanh %114 : vector<1x32xf32>
    %116 = arith.mulf %111, %115 : vector<1x32xf32>
    %117 = vector.extract_strided_slice %5 {offsets = [6, 0], sizes = [1, 128], strides = [1, 1]} : vector<8x128xf32> to vector<1x128xf32>
    %cst_21 = arith.constant dense<0.000000e+00> : vector<1x128xf32>
    %118 = tpu.matmul %116, %6, %cst_21 {dimension_numbers = #tpu.dot_dimension_numbers<[1], [0], [0], [1], [0, 0, 1, 1], [], []>} : vector<1x32xf32>, vector<32x128xf32>, vector<1x128xf32> -> vector<1x128xf32>
    %119 = arith.addf %117, %118 : vector<1x128xf32>
    %120 = arith.negf %119 : vector<1x128xf32>
    %121 = math.exp %120 : vector<1x128xf32>
    %cst_22 = arith.constant 1.000000e+00 : f32
    %122 = vector.broadcast %cst_22 : f32 to vector<1x128xf32>
    %123 = arith.addf %122, %121 : vector<1x128xf32>
    %124 = arith.divf %122, %123 : vector<1x128xf32>
    %125 = math.tanh %119 : vector<1x128xf32>
    %126 = vector.extract_strided_slice %124 {offsets = [0, 0], sizes = [1, 32], strides = [1, 1]} : vector<1x128xf32> to vector<1x32xf32>
    %127 = vector.extract_strided_slice %124 {offsets = [0, 32], sizes = [1, 32], strides = [1, 1]} : vector<1x128xf32> to vector<1x32xf32>
    %128 = vector.extract_strided_slice %125 {offsets = [0, 64], sizes = [1, 32], strides = [1, 1]} : vector<1x128xf32> to vector<1x32xf32>
    %129 = vector.extract_strided_slice %124 {offsets = [0, 96], sizes = [1, 32], strides = [1, 1]} : vector<1x128xf32> to vector<1x32xf32>
    %130 = arith.mulf %127, %114 : vector<1x32xf32>
    %131 = arith.mulf %126, %128 : vector<1x32xf32>
    %132 = arith.addf %130, %131 : vector<1x32xf32>
    %133 = math.tanh %132 : vector<1x32xf32>
    %134 = arith.mulf %129, %133 : vector<1x32xf32>
    %135 = vector.extract_strided_slice %5 {offsets = [7, 0], sizes = [1, 128], strides = [1, 1]} : vector<8x128xf32> to vector<1x128xf32>
    %cst_23 = arith.constant dense<0.000000e+00> : vector<1x128xf32>
    %136 = tpu.matmul %134, %6, %cst_23 {dimension_numbers = #tpu.dot_dimension_numbers<[1], [0], [0], [1], [0, 0, 1, 1], [], []>} : vector<1x32xf32>, vector<32x128xf32>, vector<1x128xf32> -> vector<1x128xf32>
    %137 = arith.addf %135, %136 : vector<1x128xf32>
    %138 = arith.negf %137 : vector<1x128xf32>
    %139 = math.exp %138 : vector<1x128xf32>
    %cst_24 = arith.constant 1.000000e+00 : f32
    %140 = vector.broadcast %cst_24 : f32 to vector<1x128xf32>
    %141 = arith.addf %140, %139 : vector<1x128xf32>
    %142 = arith.divf %140, %141 : vector<1x128xf32>
    %143 = math.tanh %137 : vector<1x128xf32>
    %144 = vector.extract_strided_slice %142 {offsets = [0, 0], sizes = [1, 32], strides = [1, 1]} : vector<1x128xf32> to vector<1x32xf32>
    %145 = vector.extract_strided_slice %142 {offsets = [0, 32], sizes = [1, 32], strides = [1, 1]} : vector<1x128xf32> to vector<1x32xf32>
    %146 = vector.extract_strided_slice %143 {offsets = [0, 64], sizes = [1, 32], strides = [1, 1]} : vector<1x128xf32> to vector<1x32xf32>
    %147 = vector.extract_strided_slice %142 {offsets = [0, 96], sizes = [1, 32], strides = [1, 1]} : vector<1x128xf32> to vector<1x32xf32>
    %148 = arith.mulf %145, %132 : vector<1x32xf32>
    %149 = arith.mulf %144, %146 : vector<1x32xf32>
    %150 = arith.addf %148, %149 : vector<1x32xf32>
    %151 = math.tanh %150 : vector<1x32xf32>
    %152 = arith.mulf %147, %151 : vector<1x32xf32>
    %153 = tpu.concatenate %26, %44, %62, %80, %98, %116, %134, %152 in 0 : vector<1x32xf32>, vector<1x32xf32>, vector<1x32xf32>, vector<1x32xf32>, vector<1x32xf32>, vector<1x32xf32>, vector<1x32xf32>, vector<1x32xf32> -> vector<8x32xf32>
    %154 = tpu.concatenate %152, %134, %116, %98, %80, %62, %44, %26 in 0 : vector<1x32xf32>, vector<1x32xf32>, vector<1x32xf32>, vector<1x32xf32>, vector<1x32xf32>, vector<1x32xf32>, vector<1x32xf32>, vector<1x32xf32> -> vector<8x32xf32>
    %c0_25 = arith.constant 0 : index
    %c0_26 = arith.constant 0 : index
    %155 = vector.load %arg5[%c0_25, %c0_26] : memref<32x128xf32, #tpu.memory_space<vmem>>, vector<32x128xf32>
    %cst_27 = arith.constant dense<0.000000e+00> : vector<8x128xf32>
    %156 = tpu.matmul %153, %155, %cst_27 {dimension_numbers = #tpu.dot_dimension_numbers<[1], [0], [0], [1], [0, 0, 1, 1], [], []>} : vector<8x32xf32>, vector<32x128xf32>, vector<8x128xf32> -> vector<8x128xf32>
    %c0_28 = arith.constant 0 : index
    %c0_29 = arith.constant 0 : index
    %157 = vector.load %arg6[%c0_28, %c0_29] : memref<32x128xf32, #tpu.memory_space<vmem>>, vector<32x128xf32>
    %cst_30 = arith.constant dense<0.000000e+00> : vector<8x128xf32>
    %158 = tpu.matmul %154, %157, %cst_30 {dimension_numbers = #tpu.dot_dimension_numbers<[1], [0], [0], [1], [0, 0, 1, 1], [], []>} : vector<8x32xf32>, vector<32x128xf32>, vector<8x128xf32> -> vector<8x128xf32>
    %159 = arith.addf %156, %158 : vector<8x128xf32>
    %c0_31 = arith.constant 0 : index
    %c0_32 = arith.constant 0 : index
    %160 = vector.load %arg7[%c0_31, %c0_32] : memref<1x128xf32, #tpu.memory_space<vmem>>, vector<1x128xf32>
    %161 = vector.broadcast %160 : vector<1x128xf32> to vector<8x128xf32>
    %162 = arith.addf %159, %161 : vector<8x128xf32>
    %c0_33 = arith.constant 0 : index
    %c0_34 = arith.constant 0 : index
    %163 = vector.load %arg10[%c0_33, %c0_34] : memref<8x128xf32, #tpu.memory_space<vmem>>, vector<8x128xf32>
    tpu.vector_store %arg10[%c0_33, %c0_34], %162 {strides = array<i32>} : memref<8x128xf32, #tpu.memory_space<vmem>>, vector<8x128xf32>,
    %c0_35 = arith.constant 0 : index
    %c0_36 = arith.constant 0 : index
    %164 = vector.load %arg8[%c0_35, %c0_36] : memref<8x128xf32, #tpu.memory_space<vmem>>, vector<8x128xf32>
    %165 = tpu.iota {dimensions = array<i32: 0>} : vector<8x128xi32>
    %166 = tpu.iota {dimensions = array<i32: 1>} : vector<8x128xi32>
    %167 = arith.cmpi eq, %165, %166 : vector<8x128xi32>
    %168 = arith.sitofp %165 : vector<8x128xi32> to vector<8x128xf32>
    %169 = tpu.iota {dimensions = array<i32: 0>} : vector<8x1xi32>
    %c3_i32 = arith.constant 3 : i32
    %170 = vector.broadcast %c3_i32 : i32 to vector<8x1xi32>
    %171 = arith.cmpi eq, %169, %170 : vector<8x1xi32>
    %cst_37 = arith.constant 0.000000e+00 : f32
    %cst_38 = arith.constant -1.000000e+04 : f32
    %172 = vector.broadcast %cst_37 : f32 to vector<8x1xf32>
    %173 = vector.broadcast %cst_38 : f32 to vector<8x1xf32>
    %174 = arith.select %171, %172, %173 : vector<8x1xi1>, vector<8x1xf32>
    %c5_i32 = arith.constant 5 : i32
    %175 = vector.broadcast %c5_i32 : i32 to vector<8x1xi32>
    %176 = arith.cmpi slt, %169, %175 : vector<8x1xi32>
    %cst_39 = arith.constant -1.000000e+09 : f32
    %177 = vector.broadcast %cst_39 : f32 to vector<8x1xf32>
    %178 = arith.select %176, %174, %177 : vector<8x1xi1>, vector<8x1xf32>
    %179 = vector.broadcast %178 : vector<8x1xf32> to vector<8x128xf32>
    %180 = arith.addf %164, %179 : vector<8x128xf32>
    %cst_40 = arith.constant dense<0xFF800000> : vector<128xf32>
    %181 = vector.multi_reduction <maximumf>, %180, %cst_40 [0] : vector<8x128xf32> to vector<128xf32>
    %182 = vector.shape_cast %181 : vector<128xf32> to vector<1x128xf32>
    %183 = vector.broadcast %182 : vector<1x128xf32> to vector<8x128xf32>
    %184 = arith.cmpf oeq, %180, %183 : vector<8x128xf32>
    %cst_41 = arith.constant 1.000000e+09 : f32
    %185 = vector.broadcast %cst_41 : f32 to vector<8x128xf32>
    %186 = arith.select %184, %168, %185 : vector<8x128xi1>, vector<8x128xf32>
    %cst_42 = arith.constant dense<0x7F800000> : vector<128xf32>
    %187 = vector.multi_reduction <minimumf>, %186, %cst_42 [0] : vector<8x128xf32> to vector<128xf32>
    %188 = vector.shape_cast %187 : vector<128xf32> to vector<1x128xf32>
    %189 = arith.fptosi %188 : vector<1x128xf32> to vector<1x128xi32>
    %190 = vector.extract_strided_slice %162 {offsets = [0, 0], sizes = [1, 128], strides = [1, 1]} : vector<8x128xf32> to vector<1x128xf32>
    %191 = arith.addf %182, %190 : vector<1x128xf32>
    %cst_43 = arith.constant 0.000000e+00 : f32
    %192 = vector.shape_cast %191 : vector<1x128xf32> to vector<1x128xf32>
    %193 = vector.broadcast %192 : vector<1x128xf32> to vector<8x128xf32>
    %194 = vector.broadcast %cst_43 : f32 to vector<8x128xf32>
    %195 = arith.select %167, %193, %194 : vector<8x128xi1>, vector<8x128xf32>
    %cst_44 = arith.constant dense<0.000000e+00> : vector<8xf32>
    %196 = vector.multi_reduction <add>, %195, %cst_44 [1] : vector<8x128xf32> to vector<8xf32>
    %197 = vector.shape_cast %196 : vector<8xf32> to vector<8x1xf32>
    %198 = vector.broadcast %197 : vector<8x1xf32> to vector<8x128xf32>
    %199 = arith.addf %164, %198 : vector<8x128xf32>
    %cst_45 = arith.constant dense<0xFF800000> : vector<128xf32>
    %200 = vector.multi_reduction <maximumf>, %199, %cst_45 [0] : vector<8x128xf32> to vector<128xf32>
    %201 = vector.shape_cast %200 : vector<128xf32> to vector<1x128xf32>
    %202 = vector.broadcast %201 : vector<1x128xf32> to vector<8x128xf32>
    %203 = arith.cmpf oeq, %199, %202 : vector<8x128xf32>
    %cst_46 = arith.constant 1.000000e+09 : f32
    %204 = vector.broadcast %cst_46 : f32 to vector<8x128xf32>
    %205 = arith.select %203, %168, %204 : vector<8x128xi1>, vector<8x128xf32>
    %cst_47 = arith.constant dense<0x7F800000> : vector<128xf32>
    %206 = vector.multi_reduction <minimumf>, %205, %cst_47 [0] : vector<8x128xf32> to vector<128xf32>
    %207 = vector.shape_cast %206 : vector<128xf32> to vector<1x128xf32>
    %208 = arith.fptosi %207 : vector<1x128xf32> to vector<1x128xi32>
    %209 = vector.extract_strided_slice %162 {offsets = [1, 0], sizes = [1, 128], strides = [1, 1]} : vector<8x128xf32> to vector<1x128xf32>
    %210 = arith.addf %201, %209 : vector<1x128xf32>
    %cst_48 = arith.constant 0.000000e+00 : f32
    %211 = vector.shape_cast %210 : vector<1x128xf32> to vector<1x128xf32>
    %212 = vector.broadcast %211 : vector<1x128xf32> to vector<8x128xf32>
    %213 = vector.broadcast %cst_48 : f32 to vector<8x128xf32>
    %214 = arith.select %167, %212, %213 : vector<8x128xi1>, vector<8x128xf32>
    %cst_49 = arith.constant dense<0.000000e+00> : vector<8xf32>
    %215 = vector.multi_reduction <add>, %214, %cst_49 [1] : vector<8x128xf32> to vector<8xf32>
    %216 = vector.shape_cast %215 : vector<8xf32> to vector<8x1xf32>
    %217 = vector.broadcast %216 : vector<8x1xf32> to vector<8x128xf32>
    %218 = arith.addf %164, %217 : vector<8x128xf32>
    %cst_50 = arith.constant dense<0xFF800000> : vector<128xf32>
    %219 = vector.multi_reduction <maximumf>, %218, %cst_50 [0] : vector<8x128xf32> to vector<128xf32>
    %220 = vector.shape_cast %219 : vector<128xf32> to vector<1x128xf32>
    %221 = vector.broadcast %220 : vector<1x128xf32> to vector<8x128xf32>
    %222 = arith.cmpf oeq, %218, %221 : vector<8x128xf32>
    %cst_51 = arith.constant 1.000000e+09 : f32
    %223 = vector.broadcast %cst_51 : f32 to vector<8x128xf32>
    %224 = arith.select %222, %168, %223 : vector<8x128xi1>, vector<8x128xf32>
    %cst_52 = arith.constant dense<0x7F800000> : vector<128xf32>
    %225 = vector.multi_reduction <minimumf>, %224, %cst_52 [0] : vector<8x128xf32> to vector<128xf32>
    %226 = vector.shape_cast %225 : vector<128xf32> to vector<1x128xf32>
    %227 = arith.fptosi %226 : vector<1x128xf32> to vector<1x128xi32>
    %228 = vector.extract_strided_slice %162 {offsets = [2, 0], sizes = [1, 128], strides = [1, 1]} : vector<8x128xf32> to vector<1x128xf32>
    %229 = arith.addf %220, %228 : vector<1x128xf32>
    %cst_53 = arith.constant 0.000000e+00 : f32
    %230 = vector.shape_cast %229 : vector<1x128xf32> to vector<1x128xf32>
    %231 = vector.broadcast %230 : vector<1x128xf32> to vector<8x128xf32>
    %232 = vector.broadcast %cst_53 : f32 to vector<8x128xf32>
    %233 = arith.select %167, %231, %232 : vector<8x128xi1>, vector<8x128xf32>
    %cst_54 = arith.constant dense<0.000000e+00> : vector<8xf32>
    %234 = vector.multi_reduction <add>, %233, %cst_54 [1] : vector<8x128xf32> to vector<8xf32>
    %235 = vector.shape_cast %234 : vector<8xf32> to vector<8x1xf32>
    %236 = vector.broadcast %235 : vector<8x1xf32> to vector<8x128xf32>
    %237 = arith.addf %164, %236 : vector<8x128xf32>
    %cst_55 = arith.constant dense<0xFF800000> : vector<128xf32>
    %238 = vector.multi_reduction <maximumf>, %237, %cst_55 [0] : vector<8x128xf32> to vector<128xf32>
    %239 = vector.shape_cast %238 : vector<128xf32> to vector<1x128xf32>
    %240 = vector.broadcast %239 : vector<1x128xf32> to vector<8x128xf32>
    %241 = arith.cmpf oeq, %237, %240 : vector<8x128xf32>
    %cst_56 = arith.constant 1.000000e+09 : f32
    %242 = vector.broadcast %cst_56 : f32 to vector<8x128xf32>
    %243 = arith.select %241, %168, %242 : vector<8x128xi1>, vector<8x128xf32>
    %cst_57 = arith.constant dense<0x7F800000> : vector<128xf32>
    %244 = vector.multi_reduction <minimumf>, %243, %cst_57 [0] : vector<8x128xf32> to vector<128xf32>
    %245 = vector.shape_cast %244 : vector<128xf32> to vector<1x128xf32>
    %246 = arith.fptosi %245 : vector<1x128xf32> to vector<1x128xi32>
    %247 = vector.extract_strided_slice %162 {offsets = [3, 0], sizes = [1, 128], strides = [1, 1]} : vector<8x128xf32> to vector<1x128xf32>
    %248 = arith.addf %239, %247 : vector<1x128xf32>
    %cst_58 = arith.constant 0.000000e+00 : f32
    %249 = vector.shape_cast %248 : vector<1x128xf32> to vector<1x128xf32>
    %250 = vector.broadcast %249 : vector<1x128xf32> to vector<8x128xf32>
    %251 = vector.broadcast %cst_58 : f32 to vector<8x128xf32>
    %252 = arith.select %167, %250, %251 : vector<8x128xi1>, vector<8x128xf32>
    %cst_59 = arith.constant dense<0.000000e+00> : vector<8xf32>
    %253 = vector.multi_reduction <add>, %252, %cst_59 [1] : vector<8x128xf32> to vector<8xf32>
    %254 = vector.shape_cast %253 : vector<8xf32> to vector<8x1xf32>
    %255 = vector.broadcast %254 : vector<8x1xf32> to vector<8x128xf32>
    %256 = arith.addf %164, %255 : vector<8x128xf32>
    %cst_60 = arith.constant dense<0xFF800000> : vector<128xf32>
    %257 = vector.multi_reduction <maximumf>, %256, %cst_60 [0] : vector<8x128xf32> to vector<128xf32>
    %258 = vector.shape_cast %257 : vector<128xf32> to vector<1x128xf32>
    %259 = vector.broadcast %258 : vector<1x128xf32> to vector<8x128xf32>
    %260 = arith.cmpf oeq, %256, %259 : vector<8x128xf32>
    %cst_61 = arith.constant 1.000000e+09 : f32
    %261 = vector.broadcast %cst_61 : f32 to vector<8x128xf32>
    %262 = arith.select %260, %168, %261 : vector<8x128xi1>, vector<8x128xf32>
    %cst_62 = arith.constant dense<0x7F800000> : vector<128xf32>
    %263 = vector.multi_reduction <minimumf>, %262, %cst_62 [0] : vector<8x128xf32> to vector<128xf32>
    %264 = vector.shape_cast %263 : vector<128xf32> to vector<1x128xf32>
    %265 = arith.fptosi %264 : vector<1x128xf32> to vector<1x128xi32>
    %266 = vector.extract_strided_slice %162 {offsets = [4, 0], sizes = [1, 128], strides = [1, 1]} : vector<8x128xf32> to vector<1x128xf32>
    %267 = arith.addf %258, %266 : vector<1x128xf32>
    %cst_63 = arith.constant 0.000000e+00 : f32
    %268 = vector.shape_cast %267 : vector<1x128xf32> to vector<1x128xf32>
    %269 = vector.broadcast %268 : vector<1x128xf32> to vector<8x128xf32>
    %270 = vector.broadcast %cst_63 : f32 to vector<8x128xf32>
    %271 = arith.select %167, %269, %270 : vector<8x128xi1>, vector<8x128xf32>
    %cst_64 = arith.constant dense<0.000000e+00> : vector<8xf32>
    %272 = vector.multi_reduction <add>, %271, %cst_64 [1] : vector<8x128xf32> to vector<8xf32>
    %273 = vector.shape_cast %272 : vector<8xf32> to vector<8x1xf32>
    %274 = vector.broadcast %273 : vector<8x1xf32> to vector<8x128xf32>
    %275 = arith.addf %164, %274 : vector<8x128xf32>
    %cst_65 = arith.constant dense<0xFF800000> : vector<128xf32>
    %276 = vector.multi_reduction <maximumf>, %275, %cst_65 [0] : vector<8x128xf32> to vector<128xf32>
    %277 = vector.shape_cast %276 : vector<128xf32> to vector<1x128xf32>
    %278 = vector.broadcast %277 : vector<1x128xf32> to vector<8x128xf32>
    %279 = arith.cmpf oeq, %275, %278 : vector<8x128xf32>
    %cst_66 = arith.constant 1.000000e+09 : f32
    %280 = vector.broadcast %cst_66 : f32 to vector<8x128xf32>
    %281 = arith.select %279, %168, %280 : vector<8x128xi1>, vector<8x128xf32>
    %cst_67 = arith.constant dense<0x7F800000> : vector<128xf32>
    %282 = vector.multi_reduction <minimumf>, %281, %cst_67 [0] : vector<8x128xf32> to vector<128xf32>
    %283 = vector.shape_cast %282 : vector<128xf32> to vector<1x128xf32>
    %284 = arith.fptosi %283 : vector<1x128xf32> to vector<1x128xi32>
    %285 = vector.extract_strided_slice %162 {offsets = [5, 0], sizes = [1, 128], strides = [1, 1]} : vector<8x128xf32> to vector<1x128xf32>
    %286 = arith.addf %277, %285 : vector<1x128xf32>
    %cst_68 = arith.constant 0.000000e+00 : f32
    %287 = vector.shape_cast %286 : vector<1x128xf32> to vector<1x128xf32>
    %288 = vector.broadcast %287 : vector<1x128xf32> to vector<8x128xf32>
    %289 = vector.broadcast %cst_68 : f32 to vector<8x128xf32>
    %290 = arith.select %167, %288, %289 : vector<8x128xi1>, vector<8x128xf32>
    %cst_69 = arith.constant dense<0.000000e+00> : vector<8xf32>
    %291 = vector.multi_reduction <add>, %290, %cst_69 [1] : vector<8x128xf32> to vector<8xf32>
    %292 = vector.shape_cast %291 : vector<8xf32> to vector<8x1xf32>
    %293 = vector.broadcast %292 : vector<8x1xf32> to vector<8x128xf32>
    %294 = arith.addf %164, %293 : vector<8x128xf32>
    %cst_70 = arith.constant dense<0xFF800000> : vector<128xf32>
    %295 = vector.multi_reduction <maximumf>, %294, %cst_70 [0] : vector<8x128xf32> to vector<128xf32>
    %296 = vector.shape_cast %295 : vector<128xf32> to vector<1x128xf32>
    %297 = vector.broadcast %296 : vector<1x128xf32> to vector<8x128xf32>
    %298 = arith.cmpf oeq, %294, %297 : vector<8x128xf32>
    %cst_71 = arith.constant 1.000000e+09 : f32
    %299 = vector.broadcast %cst_71 : f32 to vector<8x128xf32>
    %300 = arith.select %298, %168, %299 : vector<8x128xi1>, vector<8x128xf32>
    %cst_72 = arith.constant dense<0x7F800000> : vector<128xf32>
    %301 = vector.multi_reduction <minimumf>, %300, %cst_72 [0] : vector<8x128xf32> to vector<128xf32>
    %302 = vector.shape_cast %301 : vector<128xf32> to vector<1x128xf32>
    %303 = arith.fptosi %302 : vector<1x128xf32> to vector<1x128xi32>
    %304 = vector.extract_strided_slice %162 {offsets = [6, 0], sizes = [1, 128], strides = [1, 1]} : vector<8x128xf32> to vector<1x128xf32>
    %305 = arith.addf %296, %304 : vector<1x128xf32>
    %cst_73 = arith.constant 0.000000e+00 : f32
    %306 = vector.shape_cast %305 : vector<1x128xf32> to vector<1x128xf32>
    %307 = vector.broadcast %306 : vector<1x128xf32> to vector<8x128xf32>
    %308 = vector.broadcast %cst_73 : f32 to vector<8x128xf32>
    %309 = arith.select %167, %307, %308 : vector<8x128xi1>, vector<8x128xf32>
    %cst_74 = arith.constant dense<0.000000e+00> : vector<8xf32>
    %310 = vector.multi_reduction <add>, %309, %cst_74 [1] : vector<8x128xf32> to vector<8xf32>
    %311 = vector.shape_cast %310 : vector<8xf32> to vector<8x1xf32>
    %312 = vector.broadcast %311 : vector<8x1xf32> to vector<8x128xf32>
    %313 = arith.addf %164, %312 : vector<8x128xf32>
    %cst_75 = arith.constant dense<0xFF800000> : vector<128xf32>
    %314 = vector.multi_reduction <maximumf>, %313, %cst_75 [0] : vector<8x128xf32> to vector<128xf32>
    %315 = vector.shape_cast %314 : vector<128xf32> to vector<1x128xf32>
    %316 = vector.broadcast %315 : vector<1x128xf32> to vector<8x128xf32>
    %317 = arith.cmpf oeq, %313, %316 : vector<8x128xf32>
    %cst_76 = arith.constant 1.000000e+09 : f32
    %318 = vector.broadcast %cst_76 : f32 to vector<8x128xf32>
    %319 = arith.select %317, %168, %318 : vector<8x128xi1>, vector<8x128xf32>
    %cst_77 = arith.constant dense<0x7F800000> : vector<128xf32>
    %320 = vector.multi_reduction <minimumf>, %319, %cst_77 [0] : vector<8x128xf32> to vector<128xf32>
    %321 = vector.shape_cast %320 : vector<128xf32> to vector<1x128xf32>
    %322 = arith.fptosi %321 : vector<1x128xf32> to vector<1x128xi32>
    %323 = vector.extract_strided_slice %162 {offsets = [7, 0], sizes = [1, 128], strides = [1, 1]} : vector<8x128xf32> to vector<1x128xf32>
    %324 = arith.addf %315, %323 : vector<1x128xf32>
    %325 = tpu.concatenate %189, %208, %227, %246, %265, %284, %303, %322 in 0 : vector<1x128xi32>, vector<1x128xi32>, vector<1x128xi32>, vector<1x128xi32>, vector<1x128xi32>, vector<1x128xi32>, vector<1x128xi32>, vector<1x128xi32> -> vector<8x128xi32>
    %c0_78 = arith.constant 0 : index
    %c0_79 = arith.constant 0 : index
    %326 = vector.load %arg11[%c0_78, %c0_79] : memref<8x128xi32, #tpu.memory_space<vmem>>, vector<8x128xi32>
    tpu.vector_store %arg11[%c0_78, %c0_79], %325 {strides = array<i32>} : memref<8x128xi32, #tpu.memory_space<vmem>>, vector<8x128xi32>,
    %c0_80 = arith.constant 0 : index
    %c0_81 = arith.constant 0 : index
    %327 = vector.load %arg9[%c0_80, %c0_81] : memref<1x128xf32, #tpu.memory_space<vmem>>, vector<1x128xf32>
    %328 = arith.addf %324, %327 : vector<1x128xf32>
    %c0_82 = arith.constant 0 : index
    %c0_83 = arith.constant 0 : index
    %329 = vector.load %arg12[%c0_82, %c0_83] : memref<1x128xf32, #tpu.memory_space<vmem>>, vector<1x128xf32>
    tpu.vector_store %arg12[%c0_82, %c0_83], %328 {strides = array<i32>} : memref<1x128xf32, #tpu.memory_space<vmem>>, vector<1x128xf32>,
    return
  }
  func.func @transform_0(%arg0: i32) -> (i32, i32) {
    %c0_i32 = arith.constant 0 : i32
    %c0_i32_0 = arith.constant 0 : i32
    %c0_i32_1 = arith.constant 0 : i32
    return %c0_i32, %c0_i32_0 : i32, i32
  }
  func.func @transform_1(%arg0: i32) -> (i32, i32) {
    %c0_i32 = arith.constant 0 : i32
    %c0_i32_0 = arith.constant 0 : i32
    %c0_i32_1 = arith.constant 0 : i32
    return %c0_i32, %c0_i32_0 : i32, i32
  }
  func.func @transform_2(%arg0: i32) -> (i32, i32) {
    %c0_i32 = arith.constant 0 : i32
    %c0_i32_0 = arith.constant 0 : i32
    %c0_i32_1 = arith.constant 0 : i32
    return %c0_i32, %c0_i32_0 : i32, i32
  }
  func.func @transform_3(%arg0: i32) -> (i32, i32) {
    %c0_i32 = arith.constant 0 : i32
    %c0_i32_0 = arith.constant 0 : i32
    %c0_i32_1 = arith.constant 0 : i32
    return %c0_i32, %c0_i32_0 : i32, i32
  }
  func.func @transform_4(%arg0: i32) -> (i32, i32) {
    %c0_i32 = arith.constant 0 : i32
    %c0_i32_0 = arith.constant 0 : i32
    %c0_i32_1 = arith.constant 0 : i32
    return %c0_i32, %c0_i32_0 : i32, i32
  }
  func.func @transform_5(%arg0: i32) -> (i32, i32) {
    %c0_i32 = arith.constant 0 : i32
    %c0_i32_0 = arith.constant 0 : i32
    %c0_i32_1 = arith.constant 0 : i32
    return %c0_i32, %c0_i32_0 : i32, i32
  }
  func.func @transform_6(%arg0: i32) -> (i32, i32) {
    %c0_i32 = arith.constant 0 : i32
    %c0_i32_0 = arith.constant 0 : i32
    %c0_i32_1 = arith.constant 0 : i32
    return %c0_i32, %c0_i32_0 : i32, i32
  }
  func.func @transform_7(%arg0: i32) -> (i32, i32) {
    %c0_i32 = arith.constant 0 : i32
    %c0_i32_0 = arith.constant 0 : i32
    %c0_i32_1 = arith.constant 0 : i32
    return %c0_i32, %c0_i32_0 : i32, i32
  }
  func.func @transform_8(%arg0: i32) -> (i32, i32) {
    %c0_i32 = arith.constant 0 : i32
    %c0_i32_0 = arith.constant 0 : i32
    %c0_i32_1 = arith.constant 0 : i32
    return %c0_i32, %c0_i32_0 : i32, i32
  }
  func.func @transform_9(%arg0: i32) -> (i32, i32) {
    %c0_i32 = arith.constant 0 : i32
    %c0_i32_0 = arith.constant 0 : i32
    %c0_i32_1 = arith.constant 0 : i32
    return %c0_i32, %c0_i32_0 : i32, i32
  }
  func.func @transform_10(%arg0: i32) -> (i32, i32) {
    %c0_i32 = arith.constant 0 : i32
    %c0_i32_0 = arith.constant 0 : i32
    %c0_i32_1 = arith.constant 0 : i32
    return %c0_i32, %c0_i32_0 : i32, i32
  }
  func.func @transform_11(%arg0: i32) -> (i32, i32) {
    %c0_i32 = arith.constant 0 : i32
    %c0_i32_0 = arith.constant 0 : i32
    %c0_i32_1 = arith.constant 0 : i32
    return %c0_i32, %c0_i32_0 : i32, i32
  }
}

</mosaic_0001>

<llo_original>
// kernel: bilstm_crf_forward.1
$region0: #{bilstm_crf_forward.1}
  #allocation0 [shape = 'u32[]', space=smem, size = 0x4, offset = 0x4, fixed_abs, tag = 'smem constant byte address 0x4 - core index']
  #allocation1 [shape = 'u32[144,128]{1,0:T(1,128)}', space=vmem, size = 0x12000, scoped, tag = 'internal scratch']
  %s0 = inlined_call_operand.vmem [shape: f32[8,64], index: 0, kind: input, shape index: {}]
  %s1 = inlined_call_operand.vmem [shape: f32[64,128], index: 1, kind: input, shape index: {}]
  %s2 = inlined_call_operand.vmem [shape: f32[1,128], index: 2, kind: input, shape index: {}]
  %s3 = inlined_call_operand.vmem [shape: f32[32,128], index: 3, kind: input, shape index: {}]
  %s4 = inlined_call_operand.vmem [shape: f32[32,128], index: 4, kind: input, shape index: {}]
  %s5 = inlined_call_operand.hbm [shape: f32[32,128], index: 5, kind: input, shape index: {}]
  %s6 = inlined_call_operand.vmem [shape: f32[1,128], index: 6, kind: input, shape index: {}]
  %s7 = inlined_call_operand.vmem [shape: f32[8,128], index: 7, kind: input, shape index: {}]
  %s8 = inlined_call_operand.vmem [shape: f32[1,128], index: 8, kind: input, shape index: {}]
  %s9 = inlined_call_operand.hbm [shape: f32[8,128], index: 9, kind: output, shape index: {0}]
  %s10 = inlined_call_operand.vmem [shape: s32[8,128], index: 10, kind: output, shape index: {1}]
  %s11 = inlined_call_operand.vmem [shape: f32[1,128], index: 11, kind: output, shape index: {2}]
  %12 = xla_tuple %s9, %s10, %s11
  %s13 = sld [smem:[#allocation0]]
  $region66: #{bilstm_crf_forward.1} parent=0
    _
  %s15 = ssub.s32 1, %s13
  %s16 = scalar_select 0, %s15, %s13
  $region1: #{bilstm_crf_forward.1} parent=0
    #allocation2 [shape = 'u8[16384]{0}', space=vmem, size = 0x4000, scoped, tag = 'input window, operand 5, single buffered']
    #allocation3 [shape = 's32[1]{0}', space=sflag, size = 0x4, scoped, tag = 'scoped memory for bilstm_crf_forward.1']
    #allocation4 [shape = 's32[1]{0}', space=sflag, size = 0x4, scoped, tag = 'scoped memory for bilstm_crf_forward.1']
    #allocation5 [shape = 'u8[4096]{0}', space=vmem, size = 0x1000, scoped, tag = 'output window, operand 0, single buffered']
    %17 = vsyncpa [#allocation3], 0
    %18 = vsyncpa [#allocation4], 0
    // Predicated region
    $region2: #{bilstm_crf_forward.1} parent=1 // pred_check
      _
    $region3: #{bilstm_crf_forward.1} parent=1 // pred_check_branch
      %20 = sbr.rel (0) target = $region5
    $region4: #{bilstm_crf_forward.1} parent=1 // pred_region
      _
    $region5: #{bilstm_crf_forward.1} parent=1 // pred_fallthru
      _
    // Predicated region
    $region6: #{bilstm_crf_forward.1} parent=1 // pred_check
      _
    $region7: #{bilstm_crf_forward.1} parent=1 // pred_check_branch
      %22 = sbr.rel (0) target = $region9
    $region8: #{bilstm_crf_forward.1} parent=1 // pred_region
      _
    $region9: #{bilstm_crf_forward.1} parent=1 // pred_fallthru
      _
    // Predicated region
    $region10: #{bilstm_crf_forward.1} parent=1 // pred_check
      _
    $region11: #{bilstm_crf_forward.1} parent=1 // pred_check_branch
      %24 = sbr.rel (0) target = $region13
    $region12: #{bilstm_crf_forward.1} parent=1 // pred_region
      _
    $region13: #{bilstm_crf_forward.1} parent=1 // pred_fallthru
      _
    // Predicated region
    $region14: #{bilstm_crf_forward.1} parent=1 // pred_check
      _
    $region15: #{bilstm_crf_forward.1} parent=1 // pred_check_branch
      %26 = sbr.rel (0) target = $region17
    $region16: #{bilstm_crf_forward.1} parent=1 // pred_region
      _
    $region17: #{bilstm_crf_forward.1} parent=1 // pred_fallthru
      _
    // Predicated region
    $region18: #{bilstm_crf_forward.1} parent=1 // pred_check
      _
    $region19: #{bilstm_crf_forward.1} parent=1 // pred_check_branch
      %28 = sbr.rel (0) target = $region21
    $region20: #{bilstm_crf_forward.1} parent=1 // pred_region
      _
    $region21: #{bilstm_crf_forward.1} parent=1 // pred_fallthru
      _
    // Predicated region
    $region22: #{bilstm_crf_forward.1} parent=1 // pred_check
      _
    $region23: #{bilstm_crf_forward.1} parent=1 // pred_check_branch
      %30 = sbr.rel (0) target = $region25
    $region24: #{bilstm_crf_forward.1} parent=1 // pred_region
      %s32 = ssub.s32 512, 512
      %33 = vsyncadd [#allocation3], %s32
      %s34 = sshll.u32 [#allocation2], 4
      %s35 = int_to_ptr.vmem [resolvable:$true] %s34
      %40 = dma.hbm_to_vmem [thread:$0]  %s5, 512, %s35, [#allocation3], 128, 128, 8
    $region25: #{bilstm_crf_forward.1} parent=1 // pred_fallthru
      _
    // Predicated region
    $region26: #{bilstm_crf_forward.1} parent=1 // pred_check
      _
    $region27: #{bilstm_crf_forward.1} parent=1 // pred_check_branch
      %42 = sbr.rel (0) target = $region29
    $region28: #{bilstm_crf_forward.1} parent=1 // pred_region
      _
    $region29: #{bilstm_crf_forward.1} parent=1 // pred_fallthru
      _
    // Predicated region
    $region30: #{bilstm_crf_forward.1} parent=1 // pred_check
      _
    $region31: #{bilstm_crf_forward.1} parent=1 // pred_check_branch
      %44 = sbr.rel (0) target = $region33
    $region32: #{bilstm_crf_forward.1} parent=1 // pred_region
      _
    $region33: #{bilstm_crf_forward.1} parent=1 // pred_fallthru
      _
    // Predicated region
    $region34: #{bilstm_crf_forward.1} parent=1 // pred_check
      _
    $region35: #{bilstm_crf_forward.1} parent=1 // pred_check_branch
      %46 = sbr.rel (0) target = $region37
    $region36: #{bilstm_crf_forward.1} parent=1 // pred_region
      _
    $region37: #{bilstm_crf_forward.1} parent=1 // pred_fallthru
      _
    // Predicated region
    $region38: #{bilstm_crf_forward.1} parent=1 // pred_check
      _
    $region39: #{bilstm_crf_forward.1} parent=1 // pred_check_branch
      %48 = sbr.rel (0) target = $region41
    $region40: #{bilstm_crf_forward.1} parent=1 // pred_region
      %49 = dma.done [#allocation3], 512
    $region41: #{bilstm_crf_forward.1} parent=1 // pred_fallthru
      _
    %v50 = vld [vmem:[%s0] sm:$0xff]
    %v51 = vld [vmem:[%s1] sm:$0xff]
    %v52 = vld [vmem:[%s1 + $0x8] sm:$0xff]
    %v53 = vld [vmem:[%s1 + $0x10] sm:$0xff]
    %v54 = vld [vmem:[%s1 + $0x18] sm:$0xff]
    %v55 = vld [vmem:[%s1 + $0x20] sm:$0xff]
    %v56 = vld [vmem:[%s1 + $0x28] sm:$0xff]
    %v57 = vld [vmem:[%s1 + $0x30] sm:$0xff]
    %v58 = vld [vmem:[%s1 + $0x38] sm:$0xff]
    %v59 = vld [vmem:[%s2] sm:$0x1]
    %v61 = vlaneseq
    %v62 = vshrl.u32 %v61, 7
    %v63 = vsub.s32 0, %v62
    %v64 = vrot.slane %v59, %v63
    %vm66 = vcmask 523264
    %v68 = vsel %vm66, %v50, 0
    %70 = vmatprep.subr.mxu0 0.0
    %71 = vmatpush1.msra.mxu0 %v51
    %72 = vmatprep.subr.mxu0 0.0
    %73 = vmatpush1.msra.mxu0 %v52
    %74 = vmatprep.subr.mxu0 0.0
    %75 = vmatpush1.msra.mxu0 %v53
    %76 = vmatprep.subr.mxu0 0.0
    %77 = vmatpush1.msra.mxu0 %v54
    %78 = vmatprep.subr.mxu0 0.0
    %79 = vmatpush1.msra.mxu0 %v55
    %80 = vmatprep.subr.mxu0 0.0
    %81 = vmatpush1.msra.mxu0 %v56
    %82 = vmatprep.subr.mxu0 0.0
    %83 = vmatpush1.msra.mxu0 %v57
    %84 = vmatprep.subr.mxu0 0.0
    %85 = vmatpush1.msra.mxu0 %v58
    %86 = vmatprep.subr.mxu0 0.0
    %87 = vmatpush1.msra.mxu0 0.0
    %88 = vmatprep.subr.mxu0 0.0
    %89 = vmatpush1.msra.mxu0 0.0
    %90 = vmatprep.subr.mxu0 0.0
    %91 = vmatpush1.msra.mxu0 0.0
    %92 = vmatprep.subr.mxu0 0.0
    %93 = vmatpush1.msra.mxu0 0.0
    %94 = vmatprep.subr.mxu0 0.0
    %95 = vmatpush1.msra.mxu0 0.0
    %96 = vmatprep.subr.mxu0 0.0
    %97 = vmatpush1.msra.mxu0 0.0
    %98 = vmatprep.subr.mxu0 0.0
    %99 = vmatpush1.msra.mxu0 0.0
    %100 = vmatprep.subr.mxu0 0.0
    %101 = vmatpush1.msra.mxu0 0.0
    %102 = vmatprep.subr.mxu0 0.0
    %103 = vmatpush1.msra.mxu0 0.0
    %104 = vmatprep.subr.mxu0 0.0
    %105 = vmatpush1.msra.mxu0 0.0
    %106 = vmatprep.subr.mxu0 0.0
    %107 = vmatpush1.msra.mxu0 0.0
    %108 = vmatprep.subr.mxu0 0.0
    %109 = vmatpush1.msra.mxu0 0.0
    %110 = vmatprep.subr.mxu0 0.0
    %111 = vmatpush1.msra.mxu0 0.0
    %112 = vmatprep.subr.mxu0 0.0
    %113 = vmatpush1.msra.mxu0 0.0
    %114 = vmatprep.subr.mxu0 0.0
    %115 = vmatpush1.msra.mxu0 0.0
    %116 = vmatprep.subr.mxu0 0.0
    %117 = vmatpush1.msra.mxu0 0.0
    %118 = vmatprep.subr.mxu0 0.0
    %119 = vmatpush1.msra.mxu0 0.0
    %120 = vmatprep.subr.mxu0 0.0
    %121 = vmatpush1.msra.mxu0 0.0
    %122 = vmatprep.subr.mxu0 0.0
    %123 = vmatpush1.msra.mxu0 0.0
    %124 = vmatprep.subr.mxu0 0.0
    %125 = vmatpush1.msra.mxu0 0.0
    %126 = vmatprep.subr.mxu0 0.0
    %127 = vmatpush1.msra.mxu0 0.0
    %128 = vmatprep.subr.mxu0 0.0
    %129 = vmatpush1.msra.mxu0 0.0
    %130 = vmatprep.subr.mxu0 0.0
    %131 = vmatpush1.msra.mxu0 0.0
    %132 = vmatprep.subr.mxu0 0.0
    %133 = vmatpush1.msra.mxu0 0.0
    %134 = vmatprep.mubr.f32.mxu0 0.0
    %135 = vmatmul.mubr.f32.gmra.mrb[0].mxu0 %v68
    %v136 = vpop.f32.mrb[0].mxu0
    %v137 = vadd.f32 %v64, %v136
    %v138 = vpop.f32.mrb[0].mxu0
    %139 = vdwg.mxu0
    %v140 = vld [vmem:[%s3] sm:$0xff]
    %v141 = vld [vmem:[%s3 + $0x8] sm:$0xff]
    %v142 = vld [vmem:[%s3 + $0x10] sm:$0xff]
    %v143 = vld [vmem:[%s3 + $0x18] sm:$0xff]
    %vm144 = vcmask 261120
    %v146 = vsel %vm144, 0.0, 0
    %148 = vmatprep.subr.mxu0 0.0
    %149 = vmatpush1.msra.mxu0 %v140
    %150 = vmatprep.subr.mxu0 0.0
    %151 = vmatpush1.msra.mxu0 %v141
    %152 = vmatprep.subr.mxu0 0.0
    %153 = vmatpush1.msra.mxu0 %v142
    %154 = vmatprep.subr.mxu0 0.0
    %155 = vmatpush1.msra.mxu0 %v143
    %156 = vmatprep.subr.mxu0 0.0
    %157 = vmatpush1.msra.mxu0 0.0
    %158 = vmatprep.subr.mxu0 0.0
    %159 = vmatpush1.msra.mxu0 0.0
    %160 = vmatprep.subr.mxu0 0.0
    %161 = vmatpush1.msra.mxu0 0.0
    %162 = vmatprep.subr.mxu0 0.0
    %163 = vmatpush1.msra.mxu0 0.0
    %164 = vmatprep.subr.mxu0 0.0
    %165 = vmatpush1.msra.mxu0 0.0
    %166 = vmatprep.subr.mxu0 0.0
    %167 = vmatpush1.msra.mxu0 0.0
    %168 = vmatprep.subr.mxu0 0.0
    %169 = vmatpush1.msra.mxu0 0.0
    %170 = vmatprep.subr.mxu0 0.0
    %171 = vmatpush1.msra.mxu0 0.0
    %172 = vmatprep.subr.mxu0 0.0
    %173 = vmatpush1.msra.mxu0 0.0
    %174 = vmatprep.subr.mxu0 0.0
    %175 = vmatpush1.msra.mxu0 0.0
    %176 = vmatprep.subr.mxu0 0.0
    %177 = vmatpush1.msra.mxu0 0.0
    %178 = vmatprep.subr.mxu0 0.0
    %179 = vmatpush1.msra.mxu0 0.0
    %180 = vmatprep.subr.mxu0 0.0
    %181 = vmatpush1.msra.mxu0 0.0
    %182 = vmatprep.subr.mxu0 0.0
    %183 = vmatpush1.msra.mxu0 0.0
    %184 = vmatprep.subr.mxu0 0.0
    %185 = vmatpush1.msra.mxu0 0.0
    %186 = vmatprep.subr.mxu0 0.0
    %187 = vmatpush1.msra.mxu0 0.0
    %188 = vmatprep.subr.mxu0 0.0
    %189 = vmatpush1.msra.mxu0 0.0
    %190 = vmatprep.subr.mxu0 0.0
    %191 = vmatpush1.msra.mxu0 0.0
    %192 = vmatprep.subr.mxu0 0.0
    %193 = vmatpush1.msra.mxu0 0.0
    %194 = vmatprep.subr.mxu0 0.0
    %195 = vmatpush1.msra.mxu0 0.0
    %196 = vmatprep.subr.mxu0 0.0
    %197 = vmatpush1.msra.mxu0 0.0
    %198 = vmatprep.subr.mxu0 0.0
    %199 = vmatpush1.msra.mxu0 0.0
    %200 = vmatprep.subr.mxu0 0.0
    %201 = vmatpush1.msra.mxu0 0.0
    %202 = vmatprep.subr.mxu0 0.0
    %203 = vmatpush1.msra.mxu0 0.0
    %204 = vmatprep.subr.mxu0 0.0
    %205 = vmatpush1.msra.mxu0 0.0
    %206 = vmatprep.subr.mxu0 0.0
    %207 = vmatpush1.msra.mxu0 0.0
    %208 = vmatprep.subr.mxu0 0.0
    %209 = vmatpush1.msra.mxu0 0.0
    %210 = vmatprep.subr.mxu0 0.0
    %211 = vmatpush1.msra.mxu0 0.0
    %212 = vmatprep.mubr.f32.mxu0 0.0
    %213 = vmatmul.mubr.f32.gmra.mrb[0].mxu0 %v146
    %v214 = vpop.f32.mrb[0].mxu0
    %v215 = vadd.f32 0.0, %v214
    %v216 = vpop.f32.mrb[0].mxu0
    %217 = vdwg.mxu0
    %v218 = vadd.f32 %v137, %v215
    %v219 = vxor.u32 %v218, 2147483648
    %v220 = vmul.f32 %v219, 1.442695
    %v221 = vpow.pop %v220
    %v222 = vadd.f32 %v221, 1.0
    %v223 = vrcp.pop %v222
    %v224 = vmul.f32 1.0, %v223
    %v225 = vtanh.pop %v218
    %v226 = vmul.f32 %v224, 0.0
    %228 = vrot.lane.b32.xlu0 %v225, 64
    %v229 = vpop.permute.xlu0 %228
    %v231 = vmul.f32 %v224, %v229
    %233 = vrot.lane.b32.xlu0 %v231, 32
    %v234 = vpop.permute.xlu0 %233
    %v236 = vadd.f32 %v226, %v234
    %v237 = vtanh.pop %v236
    %239 = vrot.lane.b32.xlu0 %v237, 64
    %v240 = vpop.permute.xlu0 %239
    %v242 = vmul.f32 %v224, %v240
    %244 = vrot.lane.b32.xlu0 %v242, 32
    %v245 = vpop.permute.xlu0 %244
    %v246 = vsel %vm144, %v245, 0
    %248 = vmatprep.subr.mxu0 0.0
    %249 = vmatpush1.msra.mxu0 %v140
    %250 = vmatprep.subr.mxu0 0.0
    %251 = vmatpush1.msra.mxu0 %v141
    %252 = vmatprep.subr.mxu0 0.0
    %253 = vmatpush1.msra.mxu0 %v142
    %254 = vmatprep.subr.mxu0 0.0
    %255 = vmatpush1.msra.mxu0 %v143
    %256 = vmatprep.subr.mxu0 0.0
    %257 = vmatpush1.msra.mxu0 0.0
    %258 = vmatprep.subr.mxu0 0.0
    %259 = vmatpush1.msra.mxu0 0.0
    %260 = vmatprep.subr.mxu0 0.0
    %261 = vmatpush1.msra.mxu0 0.0
    %262 = vmatprep.subr.mxu0 0.0
    %263 = vmatpush1.msra.mxu0 0.0
    %264 = vmatprep.subr.mxu0 0.0
    %265 = vmatpush1.msra.mxu0 0.0
    %266 = vmatprep.subr.mxu0 0.0
    %267 = vmatpush1.msra.mxu0 0.0
    %268 = vmatprep.subr.mxu0 0.0
    %269 = vmatpush1.msra.mxu0 0.0
    %270 = vmatprep.subr.mxu0 0.0
    %271 = vmatpush1.msra.mxu0 0.0
    %272 = vmatprep.subr.mxu0 0.0
    %273 = vmatpush1.msra.mxu0 0.0
    %274 = vmatprep.subr.mxu0 0.0
    %275 = vmatpush1.msra.mxu0 0.0
    %276 = vmatprep.subr.mxu0 0.0
    %277 = vmatpush1.msra.mxu0 0.0
    %278 = vmatprep.subr.mxu0 0.0
    %279 = vmatpush1.msra.mxu0 0.0
    %280 = vmatprep.subr.mxu0 0.0
    %281 = vmatpush1.msra.mxu0 0.0
    %282 = vmatprep.subr.mxu0 0.0
    %283 = vmatpush1.msra.mxu0 0.0
    %284 = vmatprep.subr.mxu0 0.0
    %285 = vmatpush1.msra.mxu0 0.0
    %286 = vmatprep.subr.mxu0 0.0
    %287 = vmatpush1.msra.mxu0 0.0
    %288 = vmatprep.subr.mxu0 0.0
    %289 = vmatpush1.msra.mxu0 0.0
    %290 = vmatprep.subr.mxu0 0.0
    %291 = vmatpush1.msra.mxu0 0.0
    %292 = vmatprep.subr.mxu0 0.0
    %293 = vmatpush1.msra.mxu0 0.0
    %294 = vmatprep.subr.mxu0 0.0
    %295 = vmatpush1.msra.mxu0 0.0
    %296 = vmatprep.subr.mxu0 0.0
    %297 = vmatpush1.msra.mxu0 0.0
    %298 = vmatprep.subr.mxu0 0.0
    %299 = vmatpush1.msra.mxu0 0.0
    %300 = vmatprep.subr.mxu0 0.0
    %301 = vmatpush1.msra.mxu0 0.0
    %302 = vmatprep.subr.mxu0 0.0
    %303 = vmatpush1.msra.mxu0 0.0
    %304 = vmatprep.subr.mxu0 0.0
    %305 = vmatpush1.msra.mxu0 0.0
    %306 = vmatprep.subr.mxu0 0.0
    %307 = vmatpush1.msra.mxu0 0.0
    %308 = vmatprep.subr.mxu0 0.0
    %309 = vmatpush1.msra.mxu0 0.0
    %310 = vmatprep.subr.mxu0 0.0
    %311 = vmatpush1.msra.mxu0 0.0
    %312 = vmatprep.mubr.f32.mxu0 0.0
    %313 = vmatmul.mubr.f32.gmra.mrb[0].mxu0 %v246
    %v314 = vpop.f32.mrb[0].mxu0
    %v315 = vadd.f32 0.0, %v314
    %v316 = vpop.f32.mrb[0].mxu0
    %317 = vdwg.mxu0
    %v319 = vrot.slane %v315, 7
    %v321 = vadd.f32 %v137, %v319
    %v322 = vxor.u32 %v321, 2147483648
    %v323 = vmul.f32 %v322, 1.442695
    %v324 = vpow.pop %v323
    %v325 = vadd.f32 %v324, 1.0
    %v326 = vrcp.pop %v325
    %v327 = vmul.f32 1.0, %v326
    %v328 = vtanh.pop %v321
    %v330 = vrot.slane %v236, 7
    %v332 = vmul.f32 %v327, %v330
    %334 = vrot.lane.b32.xlu0 %v328, 64
    %v335 = vpop.permute.xlu0 %334
    %v337 = vmul.f32 %v327, %v335
    %339 = vrot.lane.b32.xlu0 %v337, 32
    %v340 = vpop.permute.xlu0 %339
    %v342 = vadd.f32 %v332, %v340
    %v343 = vtanh.pop %v342
    %345 = vrot.lane.b32.xlu0 %v343, 64
    %v346 = vpop.permute.xlu0 %345
    %v348 = vmul.f32 %v327, %v346
    %v350 = vrot.slane %v348, 1
    %351 = vrot.lane.b32.xlu0 %v350, 32
    %v352 = vpop.permute.xlu0 %351
    %v353 = vsel %vm144, %v352, 0
    %355 = vmatprep.subr.mxu0 0.0
    %356 = vmatpush1.msra.mxu0 %v140
    %357 = vmatprep.subr.mxu0 0.0
    %358 = vmatpush1.msra.mxu0 %v141
    %359 = vmatprep.subr.mxu0 0.0
    %360 = vmatpush1.msra.mxu0 %v142
    %361 = vmatprep.subr.mxu0 0.0
    %362 = vmatpush1.msra.mxu0 %v143
    %363 = vmatprep.subr.mxu0 0.0
    %364 = vmatpush1.msra.mxu0 0.0
    %365 = vmatprep.subr.mxu0 0.0
    %366 = vmatpush1.msra.mxu0 0.0
    %367 = vmatprep.subr.mxu0 0.0
    %368 = vmatpush1.msra.mxu0 0.0
    %369 = vmatprep.subr.mxu0 0.0
    %370 = vmatpush1.msra.mxu0 0.0
    %371 = vmatprep.subr.mxu0 0.0
    %372 = vmatpush1.msra.mxu0 0.0
    %373 = vmatprep.subr.mxu0 0.0
    %374 = vmatpush1.msra.mxu0 0.0
    %375 = vmatprep.subr.mxu0 0.0
    %376 = vmatpush1.msra.mxu0 0.0
    %377 = vmatprep.subr.mxu0 0.0
    %378 = vmatpush1.msra.mxu0 0.0
    %379 = vmatprep.subr.mxu0 0.0
    %380 = vmatpush1.msra.mxu0 0.0
    %381 = vmatprep.subr.mxu0 0.0
    %382 = vmatpush1.msra.mxu0 0.0
    %383 = vmatprep.subr.mxu0 0.0
    %384 = vmatpush1.msra.mxu0 0.0
    %385 = vmatprep.subr.mxu0 0.0
    %386 = vmatpush1.msra.mxu0 0.0
    %387 = vmatprep.subr.mxu0 0.0
    %388 = vmatpush1.msra.mxu0 0.0
    %389 = vmatprep.subr.mxu0 0.0
    %390 = vmatpush1.msra.mxu0 0.0
    %391 = vmatprep.subr.mxu0 0.0
    %392 = vmatpush1.msra.mxu0 0.0
    %393 = vmatprep.subr.mxu0 0.0
    %394 = vmatpush1.msra.mxu0 0.0
    %395 = vmatprep.subr.mxu0 0.0
    %396 = vmatpush1.msra.mxu0 0.0
    %397 = vmatprep.subr.mxu0 0.0
    %398 = vmatpush1.msra.mxu0 0.0
    %399 = vmatprep.subr.mxu0 0.0
    %400 = vmatpush1.msra.mxu0 0.0
    %401 = vmatprep.subr.mxu0 0.0
    %402 = vmatpush1.msra.mxu0 0.0
    %403 = vmatprep.subr.mxu0 0.0
    %404 = vmatpush1.msra.mxu0 0.0
    %405 = vmatprep.subr.mxu0 0.0
    %406 = vmatpush1.msra.mxu0 0.0
    %407 = vmatprep.subr.mxu0 0.0
    %408 = vmatpush1.msra.mxu0 0.0
    %409 = vmatprep.subr.mxu0 0.0
    %410 = vmatpush1.msra.mxu0 0.0
    %411 = vmatprep.subr.mxu0 0.0
    %412 = vmatpush1.msra.mxu0 0.0
    %413 = vmatprep.subr.mxu0 0.0
    %414 = vmatpush1.msra.mxu0 0.0
    %415 = vmatprep.subr.mxu0 0.0
    %416 = vmatpush1.msra.mxu0 0.0
    %417 = vmatprep.subr.mxu0 0.0
    %418 = vmatpush1.msra.mxu0 0.0
    %419 = vmatprep.mubr.f32.mxu0 0.0
    %420 = vmatmul.mubr.f32.gmra.mrb[0].mxu0 %v353
    %v421 = vpop.f32.mrb[0].mxu0
    %v422 = vadd.f32 0.0, %v421
    %v423 = vpop.f32.mrb[0].mxu0
    %424 = vdwg.mxu0
    %v426 = vrot.slane %v422, 6
    %v428 = vadd.f32 %v137, %v426
    %v429 = vxor.u32 %v428, 2147483648
    %v430 = vmul.f32 %v429, 1.442695
    %v431 = vpow.pop %v430
    %v432 = vadd.f32 %v431, 1.0
    %v433 = vrcp.pop %v432
    %v434 = vmul.f32 1.0, %v433
    %v435 = vtanh.pop %v428
    %v437 = vrot.slane %v342, 7
    %v439 = vmul.f32 %v434, %v437
    %441 = vrot.lane.b32.xlu0 %v435, 64
    %v442 = vpop.permute.xlu0 %441
    %v444 = vmul.f32 %v434, %v442
    %446 = vrot.lane.b32.xlu0 %v444, 32
    %v447 = vpop.permute.xlu0 %446
    %v449 = vadd.f32 %v439, %v447
    %v450 = vtanh.pop %v449
    %452 = vrot.lane.b32.xlu0 %v450, 64
    %v453 = vpop.permute.xlu0 %452
    %v455 = vmul.f32 %v434, %v453
    %v457 = vrot.slane %v455, 2
    %458 = vrot.lane.b32.xlu0 %v457, 32
    %v459 = vpop.permute.xlu0 %458
    %v460 = vsel %vm144, %v459, 0
    %462 = vmatprep.subr.mxu0 0.0
    %463 = vmatpush1.msra.mxu0 %v140
    %464 = vmatprep.subr.mxu0 0.0
    %465 = vmatpush1.msra.mxu0 %v141
    %466 = vmatprep.subr.mxu0 0.0
    %467 = vmatpush1.msra.mxu0 %v142
    %468 = vmatprep.subr.mxu0 0.0
    %469 = vmatpush1.msra.mxu0 %v143
    %470 = vmatprep.subr.mxu0 0.0
    %471 = vmatpush1.msra.mxu0 0.0
    %472 = vmatprep.subr.mxu0 0.0
    %473 = vmatpush1.msra.mxu0 0.0
    %474 = vmatprep.subr.mxu0 0.0
    %475 = vmatpush1.msra.mxu0 0.0
    %476 = vmatprep.subr.mxu0 0.0
    %477 = vmatpush1.msra.mxu0 0.0
    %478 = vmatprep.subr.mxu0 0.0
    %479 = vmatpush1.msra.mxu0 0.0
    %480 = vmatprep.subr.mxu0 0.0
    %481 = vmatpush1.msra.mxu0 0.0
    %482 = vmatprep.subr.mxu0 0.0
    %483 = vmatpush1.msra.mxu0 0.0
    %484 = vmatprep.subr.mxu0 0.0
    %485 = vmatpush1.msra.mxu0 0.0
    %486 = vmatprep.subr.mxu0 0.0
    %487 = vmatpush1.msra.mxu0 0.0
    %488 = vmatprep.subr.mxu0 0.0
    %489 = vmatpush1.msra.mxu0 0.0
    %490 = vmatprep.subr.mxu0 0.0
    %491 = vmatpush1.msra.mxu0 0.0
    %492 = vmatprep.subr.mxu0 0.0
    %493 = vmatpush1.msra.mxu0 0.0
    %494 = vmatprep.subr.mxu0 0.0
    %495 = vmatpush1.msra.mxu0 0.0
    %496 = vmatprep.subr.mxu0 0.0
    %497 = vmatpush1.msra.mxu0 0.0
    %498 = vmatprep.subr.mxu0 0.0
    %499 = vmatpush1.msra.mxu0 0.0
    %500 = vmatprep.subr.mxu0 0.0
    %501 = vmatpush1.msra.mxu0 0.0
    %502 = vmatprep.subr.mxu0 0.0
    %503 = vmatpush1.msra.mxu0 0.0
    %504 = vmatprep.subr.mxu0 0.0
    %505 = vmatpush1.msra.mxu0 0.0
    %506 = vmatprep.subr.mxu0 0.0
    %507 = vmatpush1.msra.mxu0 0.0
    %508 = vmatprep.subr.mxu0 0.0
    %509 = vmatpush1.msra.mxu0 0.0
    %510 = vmatprep.subr.mxu0 0.0
    %511 = vmatpush1.msra.mxu0 0.0
    %512 = vmatprep.subr.mxu0 0.0
    %513 = vmatpush1.msra.mxu0 0.0
    %514 = vmatprep.subr.mxu0 0.0
    %515 = vmatpush1.msra.mxu0 0.0
    %516 = vmatprep.subr.mxu0 0.0
    %517 = vmatpush1.msra.mxu0 0.0
    %518 = vmatprep.subr.mxu0 0.0
    %519 = vmatpush1.msra.mxu0 0.0
    %520 = vmatprep.subr.mxu0 0.0
    %521 = vmatpush1.msra.mxu0 0.0
    %522 = vmatprep.subr.mxu0 0.0
    %523 = vmatpush1.msra.mxu0 0.0
    %524 = vmatprep.subr.mxu0 0.0
    %525 = vmatpush1.msra.mxu0 0.0
    %526 = vmatprep.mubr.f32.mxu0 0.0
    %527 = vmatmul.mubr.f32.gmra.mrb[0].mxu0 %v460
    %v528 = vpop.f32.mrb[0].mxu0
    %v529 = vadd.f32 0.0, %v528
    %v530 = vpop.f32.mrb[0].mxu0
    %531 = vdwg.mxu0
    %v533 = vrot.slane %v529, 5
    %v535 = vadd.f32 %v137, %v533
    %v536 = vxor.u32 %v535, 2147483648
    %v537 = vmul.f32 %v536, 1.442695
    %v538 = vpow.pop %v537
    %v539 = vadd.f32 %v538, 1.0
    %v540 = vrcp.pop %v539
    %v541 = vmul.f32 1.0, %v540
    %v542 = vtanh.pop %v535
    %v544 = vrot.slane %v449, 7
    %v546 = vmul.f32 %v541, %v544
    %548 = vrot.lane.b32.xlu0 %v542, 64
    %v549 = vpop.permute.xlu0 %548
    %v551 = vmul.f32 %v541, %v549
    %553 = vrot.lane.b32.xlu0 %v551, 32
    %v554 = vpop.permute.xlu0 %553
    %v556 = vadd.f32 %v546, %v554
    %v557 = vtanh.pop %v556
    %559 = vrot.lane.b32.xlu0 %v557, 64
    %v560 = vpop.permute.xlu0 %559
    %v562 = vmul.f32 %v541, %v560
    %v564 = vrot.slane %v562, 3
    %565 = vrot.lane.b32.xlu0 %v564, 32
    %v566 = vpop.permute.xlu0 %565
    %v567 = vsel %vm144, %v566, 0
    %569 = vmatprep.subr.mxu0 0.0
    %570 = vmatpush1.msra.mxu0 %v140
    %571 = vmatprep.subr.mxu0 0.0
    %572 = vmatpush1.msra.mxu0 %v141
    %573 = vmatprep.subr.mxu0 0.0
    %574 = vmatpush1.msra.mxu0 %v142
    %575 = vmatprep.subr.mxu0 0.0
    %576 = vmatpush1.msra.mxu0 %v143
    %577 = vmatprep.subr.mxu0 0.0
    %578 = vmatpush1.msra.mxu0 0.0
    %579 = vmatprep.subr.mxu0 0.0
    %580 = vmatpush1.msra.mxu0 0.0
    %581 = vmatprep.subr.mxu0 0.0
    %582 = vmatpush1.msra.mxu0 0.0
    %583 = vmatprep.subr.mxu0 0.0
    %584 = vmatpush1.msra.mxu0 0.0
    %585 = vmatprep.subr.mxu0 0.0
    %586 = vmatpush1.msra.mxu0 0.0
    %587 = vmatprep.subr.mxu0 0.0
    %588 = vmatpush1.msra.mxu0 0.0
    %589 = vmatprep.subr.mxu0 0.0
    %590 = vmatpush1.msra.mxu0 0.0
    %591 = vmatprep.subr.mxu0 0.0
    %592 = vmatpush1.msra.mxu0 0.0
    %593 = vmatprep.subr.mxu0 0.0
    %594 = vmatpush1.msra.mxu0 0.0
    %595 = vmatprep.subr.mxu0 0.0
    %596 = vmatpush1.msra.mxu0 0.0
    %597 = vmatprep.subr.mxu0 0.0
    %598 = vmatpush1.msra.mxu0 0.0
    %599 = vmatprep.subr.mxu0 0.0
    %600 = vmatpush1.msra.mxu0 0.0
    %601 = vmatprep.subr.mxu0 0.0
    %602 = vmatpush1.msra.mxu0 0.0
    %603 = vmatprep.subr.mxu0 0.0
    %604 = vmatpush1.msra.mxu0 0.0
    %605 = vmatprep.subr.mxu0 0.0
    %606 = vmatpush1.msra.mxu0 0.0
    %607 = vmatprep.subr.mxu0 0.0
    %608 = vmatpush1.msra.mxu0 0.0
    %609 = vmatprep.subr.mxu0 0.0
    %610 = vmatpush1.msra.mxu0 0.0
    %611 = vmatprep.subr.mxu0 0.0
    %612 = vmatpush1.msra.mxu0 0.0
    %613 = vmatprep.subr.mxu0 0.0
    %614 = vmatpush1.msra.mxu0 0.0
    %615 = vmatprep.subr.mxu0 0.0
    %616 = vmatpush1.msra.mxu0 0.0
    %617 = vmatprep.subr.mxu0 0.0
    %618 = vmatpush1.msra.mxu0 0.0
    %619 = vmatprep.subr.mxu0 0.0
    %620 = vmatpush1.msra.mxu0 0.0
    %621 = vmatprep.subr.mxu0 0.0
    %622 = vmatpush1.msra.mxu0 0.0
    %623 = vmatprep.subr.mxu0 0.0
    %624 = vmatpush1.msra.mxu0 0.0
    %625 = vmatprep.subr.mxu0 0.0
    %626 = vmatpush1.msra.mxu0 0.0
    %627 = vmatprep.subr.mxu0 0.0
    %628 = vmatpush1.msra.mxu0 0.0
    %629 = vmatprep.subr.mxu0 0.0
    %630 = vmatpush1.msra.mxu0 0.0
    %631 = vmatprep.subr.mxu0 0.0
    %632 = vmatpush1.msra.mxu0 0.0
    %633 = vmatprep.mubr.f32.mxu0 0.0
    %634 = vmatmul.mubr.f32.gmra.mrb[0].mxu0 %v567
    %v635 = vpop.f32.mrb[0].mxu0
    %v636 = vadd.f32 0.0, %v635
    %v637 = vpop.f32.mrb[0].mxu0
    %638 = vdwg.mxu0
    %v640 = vrot.slane %v636, 4
    %v642 = vadd.f32 %v137, %v640
    %v643 = vxor.u32 %v642, 2147483648
    %v644 = vmul.f32 %v643, 1.442695
    %v645 = vpow.pop %v644
    %v646 = vadd.f32 %v645, 1.0
    %v647 = vrcp.pop %v646
    %v648 = vmul.f32 1.0, %v647
    %v649 = vtanh.pop %v642
    %v651 = vrot.slane %v556, 7
    %v653 = vmul.f32 %v648, %v651
    %655 = vrot.lane.b32.xlu0 %v649, 64
    %v656 = vpop.permute.xlu0 %655
    %v658 = vmul.f32 %v648, %v656
    %660 = vrot.lane.b32.xlu0 %v658, 32
    %v661 = vpop.permute.xlu0 %660
    %v663 = vadd.f32 %v653, %v661
    %v664 = vtanh.pop %v663
    %666 = vrot.lane.b32.xlu0 %v664, 64
    %v667 = vpop.permute.xlu0 %666
    %v669 = vmul.f32 %v648, %v667
    %v671 = vrot.slane %v669, 4
    %672 = vrot.lane.b32.xlu0 %v671, 32
    %v673 = vpop.permute.xlu0 %672
    %v674 = vsel %vm144, %v673, 0
    %676 = vmatprep.subr.mxu0 0.0
    %677 = vmatpush1.msra.mxu0 %v140
    %678 = vmatprep.subr.mxu0 0.0
    %679 = vmatpush1.msra.mxu0 %v141
    %680 = vmatprep.subr.mxu0 0.0
    %681 = vmatpush1.msra.mxu0 %v142
    %682 = vmatprep.subr.mxu0 0.0
    %683 = vmatpush1.msra.mxu0 %v143
    %684 = vmatprep.subr.mxu0 0.0
    %685 = vmatpush1.msra.mxu0 0.0
    %686 = vmatprep.subr.mxu0 0.0
    %687 = vmatpush1.msra.mxu0 0.0
    %688 = vmatprep.subr.mxu0 0.0
    %689 = vmatpush1.msra.mxu0 0.0
    %690 = vmatprep.subr.mxu0 0.0
    %691 = vmatpush1.msra.mxu0 0.0
    %692 = vmatprep.subr.mxu0 0.0
    %693 = vmatpush1.msra.mxu0 0.0
    %694 = vmatprep.subr.mxu0 0.0
    %695 = vmatpush1.msra.mxu0 0.0
    %696 = vmatprep.subr.mxu0 0.0
    %697 = vmatpush1.msra.mxu0 0.0
    %698 = vmatprep.subr.mxu0 0.0
    %699 = vmatpush1.msra.mxu0 0.0
    %700 = vmatprep.subr.mxu0 0.0
    %701 = vmatpush1.msra.mxu0 0.0
    %702 = vmatprep.subr.mxu0 0.0
    %703 = vmatpush1.msra.mxu0 0.0
    %704 = vmatprep.subr.mxu0 0.0
    %705 = vmatpush1.msra.mxu0 0.0
    %706 = vmatprep.subr.mxu0 0.0
    %707 = vmatpush1.msra.mxu0 0.0
    %708 = vmatprep.subr.mxu0 0.0
    %709 = vmatpush1.msra.mxu0 0.0
    %710 = vmatprep.subr.mxu0 0.0
    %711 = vmatpush1.msra.mxu0 0.0
    %712 = vmatprep.subr.mxu0 0.0
    %713 = vmatpush1.msra.mxu0 0.0
    %714 = vmatprep.subr.mxu0 0.0
    %715 = vmatpush1.msra.mxu0 0.0
    %716 = vmatprep.subr.mxu0 0.0
    %717 = vmatpush1.msra.mxu0 0.0
    %718 = vmatprep.subr.mxu0 0.0
    %719 = vmatpush1.msra.mxu0 0.0
    %720 = vmatprep.subr.mxu0 0.0
    %721 = vmatpush1.msra.mxu0 0.0
    %722 = vmatprep.subr.mxu0 0.0
    %723 = vmatpush1.msra.mxu0 0.0
    %724 = vmatprep.subr.mxu0 0.0
    %725 = vmatpush1.msra.mxu0 0.0
    %726 = vmatprep.subr.mxu0 0.0
    %727 = vmatpush1.msra.mxu0 0.0
    %728 = vmatprep.subr.mxu0 0.0
    %729 = vmatpush1.msra.mxu0 0.0
    %730 = vmatprep.subr.mxu0 0.0
    %731 = vmatpush1.msra.mxu0 0.0
    %732 = vmatprep.subr.mxu0 0.0
    %733 = vmatpush1.msra.mxu0 0.0
    %734 = vmatprep.subr.mxu0 0.0
    %735 = vmatpush1.msra.mxu0 0.0
    %736 = vmatprep.subr.mxu0 0.0
    %737 = vmatpush1.msra.mxu0 0.0
    %738 = vmatprep.subr.mxu0 0.0
    %739 = vmatpush1.msra.mxu0 0.0
    %740 = vmatprep.mubr.f32.mxu0 0.0
    %741 = vmatmul.mubr.f32.gmra.mrb[0].mxu0 %v674
    %v742 = vpop.f32.mrb[0].mxu0
    %v743 = vadd.f32 0.0, %v742
    %v744 = vpop.f32.mrb[0].mxu0
    %745 = vdwg.mxu0
    %v747 = vrot.slane %v743, 3
    %v749 = vadd.f32 %v137, %v747
    %v750 = vxor.u32 %v749, 2147483648
    %v751 = vmul.f32 %v750, 1.442695
    %v752 = vpow.pop %v751
    %v753 = vadd.f32 %v752, 1.0
    %v754 = vrcp.pop %v753
    %v755 = vmul.f32 1.0, %v754
    %v756 = vtanh.pop %v749
    %v758 = vrot.slane %v663, 7
    %v760 = vmul.f32 %v755, %v758
    %762 = vrot.lane.b32.xlu0 %v756, 64
    %v763 = vpop.permute.xlu0 %762
    %v765 = vmul.f32 %v755, %v763
    %767 = vrot.lane.b32.xlu0 %v765, 32
    %v768 = vpop.permute.xlu0 %767
    %v770 = vadd.f32 %v760, %v768
    %v771 = vtanh.pop %v770
    %773 = vrot.lane.b32.xlu0 %v771, 64
    %v774 = vpop.permute.xlu0 %773
    %v776 = vmul.f32 %v755, %v774
    %v778 = vrot.slane %v776, 5
    %779 = vrot.lane.b32.xlu0 %v778, 32
    %v780 = vpop.permute.xlu0 %779
    %v781 = vsel %vm144, %v780, 0
    %783 = vmatprep.subr.mxu0 0.0
    %784 = vmatpush1.msra.mxu0 %v140
    %785 = vmatprep.subr.mxu0 0.0
    %786 = vmatpush1.msra.mxu0 %v141
    %787 = vmatprep.subr.mxu0 0.0
    %788 = vmatpush1.msra.mxu0 %v142
    %789 = vmatprep.subr.mxu0 0.0
    %790 = vmatpush1.msra.mxu0 %v143
    %791 = vmatprep.subr.mxu0 0.0
    %792 = vmatpush1.msra.mxu0 0.0
    %793 = vmatprep.subr.mxu0 0.0
    %794 = vmatpush1.msra.mxu0 0.0
    %795 = vmatprep.subr.mxu0 0.0
    %796 = vmatpush1.msra.mxu0 0.0
    %797 = vmatprep.subr.mxu0 0.0
    %798 = vmatpush1.msra.mxu0 0.0
    %799 = vmatprep.subr.mxu0 0.0
    %800 = vmatpush1.msra.mxu0 0.0
    %801 = vmatprep.subr.mxu0 0.0
    %802 = vmatpush1.msra.mxu0 0.0
    %803 = vmatprep.subr.mxu0 0.0
    %804 = vmatpush1.msra.mxu0 0.0
    %805 = vmatprep.subr.mxu0 0.0
    %806 = vmatpush1.msra.mxu0 0.0
    %807 = vmatprep.subr.mxu0 0.0
    %808 = vmatpush1.msra.mxu0 0.0
    %809 = vmatprep.subr.mxu0 0.0
    %810 = vmatpush1.msra.mxu0 0.0
    %811 = vmatprep.subr.mxu0 0.0
    %812 = vmatpush1.msra.mxu0 0.0
    %813 = vmatprep.subr.mxu0 0.0
    %814 = vmatpush1.msra.mxu0 0.0
    %815 = vmatprep.subr.mxu0 0.0
    %816 = vmatpush1.msra.mxu0 0.0
    %817 = vmatprep.subr.mxu0 0.0
    %818 = vmatpush1.msra.mxu0 0.0
    %819 = vmatprep.subr.mxu0 0.0
    %820 = vmatpush1.msra.mxu0 0.0
    %821 = vmatprep.subr.mxu0 0.0
    %822 = vmatpush1.msra.mxu0 0.0
    %823 = vmatprep.subr.mxu0 0.0
    %824 = vmatpush1.msra.mxu0 0.0
    %825 = vmatprep.subr.mxu0 0.0
    %826 = vmatpush1.msra.mxu0 0.0
    %827 = vmatprep.subr.mxu0 0.0
    %828 = vmatpush1.msra.mxu0 0.0
    %829 = vmatprep.subr.mxu0 0.0
    %830 = vmatpush1.msra.mxu0 0.0
    %831 = vmatprep.subr.mxu0 0.0
    %832 = vmatpush1.msra.mxu0 0.0
    %833 = vmatprep.subr.mxu0 0.0
    %834 = vmatpush1.msra.mxu0 0.0
    %835 = vmatprep.subr.mxu0 0.0
    %836 = vmatpush1.msra.mxu0 0.0
    %837 = vmatprep.subr.mxu0 0.0
    %838 = vmatpush1.msra.mxu0 0.0
    %839 = vmatprep.subr.mxu0 0.0
    %840 = vmatpush1.msra.mxu0 0.0
    %841 = vmatprep.subr.mxu0 0.0
    %842 = vmatpush1.msra.mxu0 0.0
    %843 = vmatprep.subr.mxu0 0.0
    %844 = vmatpush1.msra.mxu0 0.0
    %845 = vmatprep.subr.mxu0 0.0
    %846 = vmatpush1.msra.mxu0 0.0
    %847 = vmatprep.mubr.f32.mxu0 0.0
    %848 = vmatmul.mubr.f32.gmra.mrb[0].mxu0 %v781
    %v849 = vpop.f32.mrb[0].mxu0
    %v850 = vadd.f32 0.0, %v849
    %v851 = vpop.f32.mrb[0].mxu0
    %852 = vdwg.mxu0
    %v854 = vrot.slane %v850, 2
    %v856 = vadd.f32 %v137, %v854
    %v857 = vxor.u32 %v856, 2147483648
    %v858 = vmul.f32 %v857, 1.442695
    %v859 = vpow.pop %v858
    %v860 = vadd.f32 %v859, 1.0
    %v861 = vrcp.pop %v860
    %v862 = vmul.f32 1.0, %v861
    %v863 = vtanh.pop %v856
    %v865 = vrot.slane %v770, 7
    %v867 = vmul.f32 %v862, %v865
    %869 = vrot.lane.b32.xlu0 %v863, 64
    %v870 = vpop.permute.xlu0 %869
    %v872 = vmul.f32 %v862, %v870
    %874 = vrot.lane.b32.xlu0 %v872, 32
    %v875 = vpop.permute.xlu0 %874
    %v877 = vadd.f32 %v867, %v875
    %v878 = vtanh.pop %v877
    %880 = vrot.lane.b32.xlu0 %v878, 64
    %v881 = vpop.permute.xlu0 %880
    %v883 = vmul.f32 %v862, %v881
    %v885 = vrot.slane %v883, 6
    %886 = vrot.lane.b32.xlu0 %v885, 32
    %v887 = vpop.permute.xlu0 %886
    %v888 = vsel %vm144, %v887, 0
    %890 = vmatprep.subr.mxu0 0.0
    %891 = vmatpush1.msra.mxu0 %v140
    %892 = vmatprep.subr.mxu0 0.0
    %893 = vmatpush1.msra.mxu0 %v141
    %894 = vmatprep.subr.mxu0 0.0
    %895 = vmatpush1.msra.mxu0 %v142
    %896 = vmatprep.subr.mxu0 0.0
    %897 = vmatpush1.msra.mxu0 %v143
    %898 = vmatprep.subr.mxu0 0.0
    %899 = vmatpush1.msra.mxu0 0.0
    %900 = vmatprep.subr.mxu0 0.0
    %901 = vmatpush1.msra.mxu0 0.0
    %902 = vmatprep.subr.mxu0 0.0
    %903 = vmatpush1.msra.mxu0 0.0
    %904 = vmatprep.subr.mxu0 0.0
    %905 = vmatpush1.msra.mxu0 0.0
    %906 = vmatprep.subr.mxu0 0.0
    %907 = vmatpush1.msra.mxu0 0.0
    %908 = vmatprep.subr.mxu0 0.0
    %909 = vmatpush1.msra.mxu0 0.0
    %910 = vmatprep.subr.mxu0 0.0
    %911 = vmatpush1.msra.mxu0 0.0
    %912 = vmatprep.subr.mxu0 0.0
    %913 = vmatpush1.msra.mxu0 0.0
    %914 = vmatprep.subr.mxu0 0.0
    %915 = vmatpush1.msra.mxu0 0.0
    %916 = vmatprep.subr.mxu0 0.0
    %917 = vmatpush1.msra.mxu0 0.0
    %918 = vmatprep.subr.mxu0 0.0
    %919 = vmatpush1.msra.mxu0 0.0
    %920 = vmatprep.subr.mxu0 0.0
    %921 = vmatpush1.msra.mxu0 0.0
    %922 = vmatprep.subr.mxu0 0.0
    %923 = vmatpush1.msra.mxu0 0.0
    %924 = vmatprep.subr.mxu0 0.0
    %925 = vmatpush1.msra.mxu0 0.0
    %926 = vmatprep.subr.mxu0 0.0
    %927 = vmatpush1.msra.mxu0 0.0
    %928 = vmatprep.subr.mxu0 0.0
    %929 = vmatpush1.msra.mxu0 0.0
    %930 = vmatprep.subr.mxu0 0.0
    %931 = vmatpush1.msra.mxu0 0.0
    %932 = vmatprep.subr.mxu0 0.0
    %933 = vmatpush1.msra.mxu0 0.0
    %934 = vmatprep.subr.mxu0 0.0
    %935 = vmatpush1.msra.mxu0 0.0
    %936 = vmatprep.subr.mxu0 0.0
    %937 = vmatpush1.msra.mxu0 0.0
    %938 = vmatprep.subr.mxu0 0.0
    %939 = vmatpush1.msra.mxu0 0.0
    %940 = vmatprep.subr.mxu0 0.0
    %941 = vmatpush1.msra.mxu0 0.0
    %942 = vmatprep.subr.mxu0 0.0
    %943 = vmatpush1.msra.mxu0 0.0
    %944 = vmatprep.subr.mxu0 0.0
    %945 = vmatpush1.msra.mxu0 0.0
    %946 = vmatprep.subr.mxu0 0.0
    %947 = vmatpush1.msra.mxu0 0.0
    %948 = vmatprep.subr.mxu0 0.0
    %949 = vmatpush1.msra.mxu0 0.0
    %950 = vmatprep.subr.mxu0 0.0
    %951 = vmatpush1.msra.mxu0 0.0
    %952 = vmatprep.subr.mxu0 0.0
    %953 = vmatpush1.msra.mxu0 0.0
    %954 = vmatprep.mubr.f32.mxu0 0.0
    %955 = vmatmul.mubr.f32.gmra.mrb[0].mxu0 %v888
    %v956 = vpop.f32.mrb[0].mxu0
    %v957 = vadd.f32 0.0, %v956
    %v958 = vpop.f32.mrb[0].mxu0
    %959 = vdwg.mxu0
    %v961 = vrot.slane %v957, 1
    %v963 = vadd.f32 %v137, %v961
    %v964 = vxor.u32 %v963, 2147483648
    %v965 = vmul.f32 %v964, 1.442695
    %v966 = vpow.pop %v965
    %v967 = vadd.f32 %v966, 1.0
    %v968 = vrcp.pop %v967
    %v969 = vmul.f32 1.0, %v968
    %v970 = vtanh.pop %v963
    %v972 = vrot.slane %v877, 7
    %v974 = vmul.f32 %v969, %v972
    %976 = vrot.lane.b32.xlu0 %v970, 64
    %v977 = vpop.permute.xlu0 %976
    %v979 = vmul.f32 %v969, %v977
    %981 = vrot.lane.b32.xlu0 %v979, 32
    %v982 = vpop.permute.xlu0 %981
    %v984 = vadd.f32 %v974, %v982
    %v985 = vtanh.pop %v984
    %987 = vrot.lane.b32.xlu0 %v985, 64
    %v988 = vpop.permute.xlu0 %987
    %v990 = vmul.f32 %v969, %v988
    %vm991 = vcmask 1040384
    %v992 = vsel %vm991, %v242, %v348
    %vm993 = vcmask 1041408
    %v994 = vsel %vm993, %v992, %v455
    %vm995 = vcmask 1042432
    %v996 = vsel %vm995, %v994, %v562
    %vm997 = vcmask 1043456
    %v998 = vsel %vm997, %v996, %v669
    %vm999 = vcmask 1044480
    %v1000 = vsel %vm999, %v998, %v776
    %vm1001 = vcmask 1045504
    %v1002 = vsel %vm1001, %v1000, %v883
    %vm1003 = vcmask 1046528
    %v1004 = vsel %vm1003, %v1002, %v990
    %v1006 = vrot.slane %v990, 7
    %v1008 = vrot.slane %v883, 5
    %v1010 = vrot.slane %v776, 3
    %v1012 = vrot.slane %v669, 1
    %v1014 = vrot.slane %v562, 7
    %v1016 = vrot.slane %v455, 5
    %v1018 = vrot.slane %v348, 3
    %v1020 = vrot.slane %v242, 1
    %v1022 = vsel %vm991, %v1006, %v1008
    %v1023 = vsel %vm993, %v1022, %v1010
    %v1024 = vsel %vm995, %v1023, %v1012
    %v1025 = vsel %vm997, %v1024, %v1014
    %v1026 = vsel %vm999, %v1025, %v1016
    %v1027 = vsel %vm1001, %v1026, %v1018
    %v1028 = vsel %vm1003, %v1027, %v1020
    %v1029 = vld [vmem:[%s4] sm:$0xff]
    %v1030 = vld [vmem:[%s4 + $0x8] sm:$0xff]
    %v1031 = vld [vmem:[%s4 + $0x10] sm:$0xff]
    %v1032 = vld [vmem:[%s4 + $0x18] sm:$0xff]
    %v1033 = vld [vmem:[#allocation2] sm:$0xff]
    %v1034 = vld [vmem:[#allocation2 + $0x8] sm:$0xff]
    %v1035 = vld [vmem:[#allocation2 + $0x10] sm:$0xff]
    %v1036 = vld [vmem:[#allocation2 + $0x18] sm:$0xff]
    %1038 = vrot.lane.b32.xlu0 %v1028, 32
    %v1039 = vpop.permute.xlu0 %1038
    %v1040 = vsel %vm144, %v1039, 0
    %1042 = vmatprep.subr.mxu0 0.0
    %1043 = vmatpush1.msra.mxu0 %v1033
    %1044 = vmatprep.subr.mxu0 0.0
    %1045 = vmatpush1.msra.mxu0 %v1034
    %1046 = vmatprep.subr.mxu0 0.0
    %1047 = vmatpush1.msra.mxu0 %v1035
    %1048 = vmatprep.subr.mxu0 0.0
    %1049 = vmatpush1.msra.mxu0 %v1036
    %1050 = vmatprep.subr.mxu0 0.0
    %1051 = vmatpush1.msra.mxu0 0.0
    %1052 = vmatprep.subr.mxu0 0.0
    %1053 = vmatpush1.msra.mxu0 0.0
    %1054 = vmatprep.subr.mxu0 0.0
    %1055 = vmatpush1.msra.mxu0 0.0
    %1056 = vmatprep.subr.mxu0 0.0
    %1057 = vmatpush1.msra.mxu0 0.0
    %1058 = vmatprep.subr.mxu0 0.0
    %1059 = vmatpush1.msra.mxu0 0.0
    %1060 = vmatprep.subr.mxu0 0.0
    %1061 = vmatpush1.msra.mxu0 0.0
    %1062 = vmatprep.subr.mxu0 0.0
    %1063 = vmatpush1.msra.mxu0 0.0
    %1064 = vmatprep.subr.mxu0 0.0
    %1065 = vmatpush1.msra.mxu0 0.0
    %1066 = vmatprep.subr.mxu0 0.0
    %1067 = vmatpush1.msra.mxu0 0.0
    %1068 = vmatprep.subr.mxu0 0.0
    %1069 = vmatpush1.msra.mxu0 0.0
    %1070 = vmatprep.subr.mxu0 0.0
    %1071 = vmatpush1.msra.mxu0 0.0
    %1072 = vmatprep.subr.mxu0 0.0
    %1073 = vmatpush1.msra.mxu0 0.0
    %1074 = vmatprep.subr.mxu0 0.0
    %1075 = vmatpush1.msra.mxu0 0.0
    %1076 = vmatprep.subr.mxu0 0.0
    %1077 = vmatpush1.msra.mxu0 0.0
    %1078 = vmatprep.subr.mxu0 0.0
    %1079 = vmatpush1.msra.mxu0 0.0
    %1080 = vmatprep.subr.mxu0 0.0
    %1081 = vmatpush1.msra.mxu0 0.0
    %1082 = vmatprep.subr.mxu0 0.0
    %1083 = vmatpush1.msra.mxu0 0.0
    %1084 = vmatprep.subr.mxu0 0.0
    %1085 = vmatpush1.msra.mxu0 0.0
    %1086 = vmatprep.subr.mxu0 0.0
    %1087 = vmatpush1.msra.mxu0 0.0
    %1088 = vmatprep.subr.mxu0 0.0
    %1089 = vmatpush1.msra.mxu0 0.0
    %1090 = vmatprep.subr.mxu0 0.0
    %1091 = vmatpush1.msra.mxu0 0.0
    %1092 = vmatprep.subr.mxu0 0.0
    %1093 = vmatpush1.msra.mxu0 0.0
    %1094 = vmatprep.subr.mxu0 0.0
    %1095 = vmatpush1.msra.mxu0 0.0
    %1096 = vmatprep.subr.mxu0 0.0
    %1097 = vmatpush1.msra.mxu0 0.0
    %1098 = vmatprep.subr.mxu0 0.0
    %1099 = vmatpush1.msra.mxu0 0.0
    %1100 = vmatprep.subr.mxu0 0.0
    %1101 = vmatpush1.msra.mxu0 0.0
    %1102 = vmatprep.subr.mxu0 0.0
    %1103 = vmatpush1.msra.mxu0 0.0
    %1104 = vmatprep.subr.mxu0 0.0
    %1105 = vmatpush1.msra.mxu0 0.0
    %1106 = vmatprep.mubr.f32.mxu0 0.0
    %1107 = vmatmul.mubr.f32.gmra.mrb[0].mxu0 %v1040
    %v1108 = vpop.f32.mrb[0].mxu0
    %v1109 = vadd.f32 0.0, %v1108
    %v1110 = vpop.f32.mrb[0].mxu0
    %1111 = vdwg.mxu0
    %1113 = vrot.lane.b32.xlu0 %v1004, 32
    %v1114 = vpop.permute.xlu0 %1113
    %v1115 = vsel %vm144, %v1114, 0
    %1117 = vmatprep.subr.mxu0 0.0
    %1118 = vmatpush1.msra.mxu0 %v1029
    %1119 = vmatprep.subr.mxu0 0.0
    %1120 = vmatpush1.msra.mxu0 %v1030
    %1121 = vmatprep.subr.mxu0 0.0
    %1122 = vmatpush1.msra.mxu0 %v1031
    %1123 = vmatprep.subr.mxu0 0.0
    %1124 = vmatpush1.msra.mxu0 %v1032
    %1125 = vmatprep.subr.mxu0 0.0
    %1126 = vmatpush1.msra.mxu0 0.0
    %1127 = vmatprep.subr.mxu0 0.0
    %1128 = vmatpush1.msra.mxu0 0.0
    %1129 = vmatprep.subr.mxu0 0.0
    %1130 = vmatpush1.msra.mxu0 0.0
    %1131 = vmatprep.subr.mxu0 0.0
    %1132 = vmatpush1.msra.mxu0 0.0
    %1133 = vmatprep.subr.mxu0 0.0
    %1134 = vmatpush1.msra.mxu0 0.0
    %1135 = vmatprep.subr.mxu0 0.0
    %1136 = vmatpush1.msra.mxu0 0.0
    %1137 = vmatprep.subr.mxu0 0.0
    %1138 = vmatpush1.msra.mxu0 0.0
    %1139 = vmatprep.subr.mxu0 0.0
    %1140 = vmatpush1.msra.mxu0 0.0
    %1141 = vmatprep.subr.mxu0 0.0
    %1142 = vmatpush1.msra.mxu0 0.0
    %1143 = vmatprep.subr.mxu0 0.0
    %1144 = vmatpush1.msra.mxu0 0.0
    %1145 = vmatprep.subr.mxu0 0.0
    %1146 = vmatpush1.msra.mxu0 0.0
    %1147 = vmatprep.subr.mxu0 0.0
    %1148 = vmatpush1.msra.mxu0 0.0
    %1149 = vmatprep.subr.mxu0 0.0
    %1150 = vmatpush1.msra.mxu0 0.0
    %1151 = vmatprep.subr.mxu0 0.0
    %1152 = vmatpush1.msra.mxu0 0.0
    %1153 = vmatprep.subr.mxu0 0.0
    %1154 = vmatpush1.msra.mxu0 0.0
    %1155 = vmatprep.subr.mxu0 0.0
    %1156 = vmatpush1.msra.mxu0 0.0
    %1157 = vmatprep.subr.mxu0 0.0
    %1158 = vmatpush1.msra.mxu0 0.0
    %1159 = vmatprep.subr.mxu0 0.0
    %1160 = vmatpush1.msra.mxu0 0.0
    %1161 = vmatprep.subr.mxu0 0.0
    %1162 = vmatpush1.msra.mxu0 0.0
    %1163 = vmatprep.subr.mxu0 0.0
    %1164 = vmatpush1.msra.mxu0 0.0
    %1165 = vmatprep.subr.mxu0 0.0
    %1166 = vmatpush1.msra.mxu0 0.0
    %1167 = vmatprep.subr.mxu0 0.0
    %1168 = vmatpush1.msra.mxu0 0.0
    %1169 = vmatprep.subr.mxu0 0.0
    %1170 = vmatpush1.msra.mxu0 0.0
    %1171 = vmatprep.subr.mxu0 0.0
    %1172 = vmatpush1.msra.mxu0 0.0
    %1173 = vmatprep.subr.mxu0 0.0
    %1174 = vmatpush1.msra.mxu0 0.0
    %1175 = vmatprep.subr.mxu0 0.0
    %1176 = vmatpush1.msra.mxu0 0.0
    %1177 = vmatprep.subr.mxu0 0.0
    %1178 = vmatpush1.msra.mxu0 0.0
    %1179 = vmatprep.subr.mxu0 0.0
    %1180 = vmatpush1.msra.mxu0 0.0
    %1181 = vmatprep.mubr.f32.mxu0 0.0
    %1182 = vmatmul.mubr.f32.gmra.mrb[0].mxu0 %v1115
    %v1183 = vpop.f32.mrb[0].mxu0
    %v1184 = vadd.f32 %v1109, %v1183
    %v1185 = vpop.f32.mrb[0].mxu0
    %1186 = vdwg.mxu0
    %v1187 = vld [vmem:[%s6] sm:$0x1]
    %v1189 = vlaneseq
    %v1190 = vshrl.u32 %v1189, 7
    %v1191 = vsub.s32 0, %v1190
    %v1192 = vrot.slane %v1187, %v1191
    %v1194 = vadd.f32 %v1184, %v1192
    %1195 = vst [vmem:[#allocation5] sm:$0xff] %v1194
    %v1196 = vld [vmem:[%s7] sm:$0xff]
    %v1197 = vlaneseq
    %v1198 = vshrl.u32 %v1197, 7
    %v1199 = vlaneseq
    %v1200 = vand.u32 %v1199, 127
    %vm1201 = vcmp.eq.s32.totalorder %v1198, %v1200
    %v1202 = vcvt.s32.f32 %v1198
    %vm1203 = vcmp.eq.s32.totalorder %v1198, 3
    %v1204 = vsel %vm1203, 0.0, -10000.0
    %vm1205 = vcmp.lt.s32.totalorder %v1198, 5
    %v1206 = vsel %vm1205, %v1204, -1e+09
    %v1207 = vadd.f32 %v1196, %v1206
    %v1208 = vrot.slane %v1207, 4
    %v1209 = vmax.f32 %v1207, %v1208
    %v1210 = vrot.slane %v1209, 2
    %v1211 = vmax.f32 %v1209, %v1210
    %v1212 = vrot.slane %v1211, 1
    %v1213 = vmax.f32 %v1211, %v1212
    %vm1214 = vcmp.eq.f32.partialorder %v1207, %v1213
    %v1215 = vsel %vm1214, %v1202, 1e+09
    %v1216 = vrot.slane %v1215, 4
    %v1217 = vmin.f32 %v1215, %v1216
    %v1218 = vrot.slane %v1217, 2
    %v1219 = vmin.f32 %v1217, %v1218
    %v1220 = vrot.slane %v1219, 1
    %v1221 = vmin.f32 %v1219, %v1220
    %v1222 = vcvt.f32.s32.to.zero.pseudo %v1221
    %v1223 = vadd.f32 %v1213, %v1194
    %v1224 = vlaneseq
    %v1225 = vshrl.u32 %v1224, 7
    %v1226 = vsub.s32 0, %v1225
    %v1227 = vrot.slane %v1223, %v1226
    %v1228 = vsel %vm1201, %v1227, 0.0
    %1229 = vadd.xlane.f32.xlu0 %v1228
    %v1230 = vpop.xlane.xlu0 %1229
    %v1231 = vadd.f32 %v1196, %v1230
    %v1232 = vrot.slane %v1231, 4
    %v1233 = vmax.f32 %v1231, %v1232
    %v1234 = vrot.slane %v1233, 2
    %v1235 = vmax.f32 %v1233, %v1234
    %v1236 = vrot.slane %v1235, 1
    %v1237 = vmax.f32 %v1235, %v1236
    %vm1238 = vcmp.eq.f32.partialorder %v1231, %v1237
    %v1239 = vsel %vm1238, %v1202, 1e+09
    %v1240 = vrot.slane %v1239, 4
    %v1241 = vmin.f32 %v1239, %v1240
    %v1242 = vrot.slane %v1241, 2
    %v1243 = vmin.f32 %v1241, %v1242
    %v1244 = vrot.slane %v1243, 1
    %v1245 = vmin.f32 %v1243, %v1244
    %v1246 = vcvt.f32.s32.to.zero.pseudo %v1245
    %v1247 = vadd.f32 %v1237, %v1194
    %v1248 = vlaneseq
    %v1249 = vshrl.u32 %v1248, 7
    %v1250 = vsub.s32 1, %v1249
    %v1251 = vrot.slane %v1247, %v1250
    %v1252 = vsel %vm1201, %v1251, 0.0
    %1253 = vadd.xlane.f32.xlu0 %v1252
    %v1254 = vpop.xlane.xlu0 %1253
    %v1255 = vadd.f32 %v1196, %v1254
    %v1256 = vrot.slane %v1255, 4
    %v1257 = vmax.f32 %v1255, %v1256
    %v1258 = vrot.slane %v1257, 2
    %v1259 = vmax.f32 %v1257, %v1258
    %v1260 = vrot.slane %v1259, 1
    %v1261 = vmax.f32 %v1259, %v1260
    %vm1262 = vcmp.eq.f32.partialorder %v1255, %v1261
    %v1263 = vsel %vm1262, %v1202, 1e+09
    %v1264 = vrot.slane %v1263, 4
    %v1265 = vmin.f32 %v1263, %v1264
    %v1266 = vrot.slane %v1265, 2
    %v1267 = vmin.f32 %v1265, %v1266
    %v1268 = vrot.slane %v1267, 1
    %v1269 = vmin.f32 %v1267, %v1268
    %v1270 = vcvt.f32.s32.to.zero.pseudo %v1269
    %v1271 = vadd.f32 %v1261, %v1194
    %v1272 = vlaneseq
    %v1273 = vshrl.u32 %v1272, 7
    %v1274 = vsub.s32 2, %v1273
    %v1275 = vrot.slane %v1271, %v1274
    %v1276 = vsel %vm1201, %v1275, 0.0
    %1277 = vadd.xlane.f32.xlu0 %v1276
    %v1278 = vpop.xlane.xlu0 %1277
    %v1279 = vadd.f32 %v1196, %v1278
    %v1280 = vrot.slane %v1279, 4
    %v1281 = vmax.f32 %v1279, %v1280
    %v1282 = vrot.slane %v1281, 2
    %v1283 = vmax.f32 %v1281, %v1282
    %v1284 = vrot.slane %v1283, 1
    %v1285 = vmax.f32 %v1283, %v1284
    %vm1286 = vcmp.eq.f32.partialorder %v1279, %v1285
    %v1287 = vsel %vm1286, %v1202, 1e+09
    %v1288 = vrot.slane %v1287, 4
    %v1289 = vmin.f32 %v1287, %v1288
    %v1290 = vrot.slane %v1289, 2
    %v1291 = vmin.f32 %v1289, %v1290
    %v1292 = vrot.slane %v1291, 1
    %v1293 = vmin.f32 %v1291, %v1292
    %v1294 = vcvt.f32.s32.to.zero.pseudo %v1293
    %v1295 = vadd.f32 %v1285, %v1194
    %v1296 = vlaneseq
    %v1297 = vshrl.u32 %v1296, 7
    %v1298 = vsub.s32 3, %v1297
    %v1299 = vrot.slane %v1295, %v1298
    %v1300 = vsel %vm1201, %v1299, 0.0
    %1301 = vadd.xlane.f32.xlu0 %v1300
    %v1302 = vpop.xlane.xlu0 %1301
    %v1303 = vadd.f32 %v1196, %v1302
    %v1304 = vrot.slane %v1303, 4
    %v1305 = vmax.f32 %v1303, %v1304
    %v1306 = vrot.slane %v1305, 2
    %v1307 = vmax.f32 %v1305, %v1306
    %v1308 = vrot.slane %v1307, 1
    %v1309 = vmax.f32 %v1307, %v1308
    %vm1310 = vcmp.eq.f32.partialorder %v1303, %v1309
    %v1311 = vsel %vm1310, %v1202, 1e+09
    %v1312 = vrot.slane %v1311, 4
    %v1313 = vmin.f32 %v1311, %v1312
    %v1314 = vrot.slane %v1313, 2
    %v1315 = vmin.f32 %v1313, %v1314
    %v1316 = vrot.slane %v1315, 1
    %v1317 = vmin.f32 %v1315, %v1316
    %v1318 = vcvt.f32.s32.to.zero.pseudo %v1317
    %v1319 = vadd.f32 %v1309, %v1194
    %v1320 = vlaneseq
    %v1321 = vshrl.u32 %v1320, 7
    %v1322 = vsub.s32 4, %v1321
    %v1323 = vrot.slane %v1319, %v1322
    %v1324 = vsel %vm1201, %v1323, 0.0
    %1325 = vadd.xlane.f32.xlu0 %v1324
    %v1326 = vpop.xlane.xlu0 %1325
    %v1327 = vadd.f32 %v1196, %v1326
    %v1328 = vrot.slane %v1327, 4
    %v1329 = vmax.f32 %v1327, %v1328
    %v1330 = vrot.slane %v1329, 2
    %v1331 = vmax.f32 %v1329, %v1330
    %v1332 = vrot.slane %v1331, 1
    %v1333 = vmax.f32 %v1331, %v1332
    %vm1334 = vcmp.eq.f32.partialorder %v1327, %v1333
    %v1335 = vsel %vm1334, %v1202, 1e+09
    %v1336 = vrot.slane %v1335, 4
    %v1337 = vmin.f32 %v1335, %v1336
    %v1338 = vrot.slane %v1337, 2
    %v1339 = vmin.f32 %v1337, %v1338
    %v1340 = vrot.slane %v1339, 1
    %v1341 = vmin.f32 %v1339, %v1340
    %v1342 = vcvt.f32.s32.to.zero.pseudo %v1341
    %v1343 = vadd.f32 %v1333, %v1194
    %v1344 = vlaneseq
    %v1345 = vshrl.u32 %v1344, 7
    %v1346 = vsub.s32 5, %v1345
    %v1347 = vrot.slane %v1343, %v1346
    %v1348 = vsel %vm1201, %v1347, 0.0
    %1349 = vadd.xlane.f32.xlu0 %v1348
    %v1350 = vpop.xlane.xlu0 %1349
    %v1351 = vadd.f32 %v1196, %v1350
    %v1352 = vrot.slane %v1351, 4
    %v1353 = vmax.f32 %v1351, %v1352
    %v1354 = vrot.slane %v1353, 2
    %v1355 = vmax.f32 %v1353, %v1354
    %v1356 = vrot.slane %v1355, 1
    %v1357 = vmax.f32 %v1355, %v1356
    %vm1358 = vcmp.eq.f32.partialorder %v1351, %v1357
    %v1359 = vsel %vm1358, %v1202, 1e+09
    %v1360 = vrot.slane %v1359, 4
    %v1361 = vmin.f32 %v1359, %v1360
    %v1362 = vrot.slane %v1361, 2
    %v1363 = vmin.f32 %v1361, %v1362
    %v1364 = vrot.slane %v1363, 1
    %v1365 = vmin.f32 %v1363, %v1364
    %v1366 = vcvt.f32.s32.to.zero.pseudo %v1365
    %v1367 = vadd.f32 %v1357, %v1194
    %v1368 = vlaneseq
    %v1369 = vshrl.u32 %v1368, 7
    %v1370 = vsub.s32 6, %v1369
    %v1371 = vrot.slane %v1367, %v1370
    %v1372 = vsel %vm1201, %v1371, 0.0
    %1373 = vadd.xlane.f32.xlu0 %v1372
    %v1374 = vpop.xlane.xlu0 %1373
    %v1375 = vadd.f32 %v1196, %v1374
    %v1376 = vrot.slane %v1375, 4
    %v1377 = vmax.f32 %v1375, %v1376
    %v1378 = vrot.slane %v1377, 2
    %v1379 = vmax.f32 %v1377, %v1378
    %v1380 = vrot.slane %v1379, 1
    %v1381 = vmax.f32 %v1379, %v1380
    %vm1382 = vcmp.eq.f32.partialorder %v1375, %v1381
    %v1383 = vsel %vm1382, %v1202, 1e+09
    %v1384 = vrot.slane %v1383, 4
    %v1385 = vmin.f32 %v1383, %v1384
    %v1386 = vrot.slane %v1385, 2
    %v1387 = vmin.f32 %v1385, %v1386
    %v1388 = vrot.slane %v1387, 1
    %v1389 = vmin.f32 %v1387, %v1388
    %v1390 = vcvt.f32.s32.to.zero.pseudo %v1389
    %v1391 = vadd.f32 %v1381, %v1194
    %v1392 = vsel %vm991, %v1222, %v1246
    %v1393 = vsel %vm993, %v1392, %v1270
    %v1394 = vsel %vm995, %v1393, %v1294
    %v1395 = vsel %vm997, %v1394, %v1318
    %v1396 = vsel %vm999, %v1395, %v1342
    %v1397 = vsel %vm1001, %v1396, %v1366
    %v1398 = vsel %vm1003, %v1397, %v1390
    %1399 = vst [vmem:[%s10] sm:$0xff] %v1398
    %v1400 = vld [vmem:[%s8] sm:$0x1]
    %v1402 = vlaneseq
    %v1403 = vshrl.u32 %v1402, 7
    %v1404 = vsub.s32 0, %v1403
    %v1405 = vrot.slane %v1400, %v1404
    %v1407 = vadd.f32 %v1391, %v1405
    %1408 = vst [vmem:[%s11 - $0x7] sm:$0x80] %v1407
    // Predicated region
    $region42: #{bilstm_crf_forward.1} parent=1 // pred_check
      _
    $region43: #{bilstm_crf_forward.1} parent=1 // pred_check_branch
      %1410 = sbr.rel (0) target = $region45
    $region44: #{bilstm_crf_forward.1} parent=1 // pred_region
      %s1412 = ssub.s32 128, 128
      %1413 = vsyncadd [#allocation4], %s1412
      %s1415 = sshll.u32 [#allocation5], 4
      %s1416 = int_to_ptr.vmem [resolvable:$true] %s1415
      %1418 = dma.vmem_to_hbm [thread:$0]  %s1416, 128, %s9, [#allocation4]
    $region45: #{bilstm_crf_forward.1} parent=1 // pred_fallthru
      _
    // Predicated region
    $region46: #{bilstm_crf_forward.1} parent=1 // pred_check
      _
    $region47: #{bilstm_crf_forward.1} parent=1 // pred_check_branch
      %1420 = sbr.rel (0) target = $region49
    $region48: #{bilstm_crf_forward.1} parent=1 // pred_region
      _
    $region49: #{bilstm_crf_forward.1} parent=1 // pred_fallthru
      _
    // Predicated region
    $region50: #{bilstm_crf_forward.1} parent=1 // pred_check
      _
    $region51: #{bilstm_crf_forward.1} parent=1 // pred_check_branch
      %1422 = sbr.rel (0) target = $region53
    $region52: #{bilstm_crf_forward.1} parent=1 // pred_region
      _
    $region53: #{bilstm_crf_forward.1} parent=1 // pred_fallthru
      _
    // Predicated region
    $region54: #{bilstm_crf_forward.1} parent=1 // pred_check
      _
    $region55: #{bilstm_crf_forward.1} parent=1 // pred_check_branch
      %1424 = sbr.rel (0) target = $region57
    $region56: #{bilstm_crf_forward.1} parent=1 // pred_region
      %1425 = dma.done [#allocation4], 128
    $region57: #{bilstm_crf_forward.1} parent=1 // pred_fallthru
      _
    // Predicated region
    $region58: #{bilstm_crf_forward.1} parent=1 // pred_check
      _
    $region59: #{bilstm_crf_forward.1} parent=1 // pred_check_branch
      %1427 = sbr.rel (0) target = $region61
    $region60: #{bilstm_crf_forward.1} parent=1 // pred_region
      _
    $region61: #{bilstm_crf_forward.1} parent=1 // pred_fallthru
      _
    // Predicated region
    $region62: #{bilstm_crf_forward.1} parent=1 // pred_check
      _
    $region63: #{bilstm_crf_forward.1} parent=1 // pred_check_branch
      %1429 = sbr.rel (0) target = $region65
    $region64: #{bilstm_crf_forward.1} parent=1 // pred_region
      _
    $region65: #{bilstm_crf_forward.1} parent=1 // pred_fallthru
      _
    %1430 = vsyncpa [#allocation3], 1
    %1431 = vsyncpa [#allocation4], 1

</llo_original>
